<compile_context>
chip_gen: v6e
topology: v6e:2x2x1
jax: 0.10.0
libtpu: 0.0.40
codegen_flags: <defaults>
</compile_context>

<pallas_src>
import functools

import jax
import jax.numpy as jnp
from jax import lax
from jax.experimental import pallas as pl
from jax.experimental.pallas import tpu as pltpu


def _mha_kernel(x_ref, wqkv_ref, wp_ref, bp_ref, o_ref):
    """One grid step = `bb` batch elements: fused QKV + per-head attention + projection."""
    bb, T, E = x_ref.shape
    H, hs, D = wp_ref.shape
    cdt = wqkv_ref.dtype                     # MXU operand dtype (f32 or bf16)

    # ---- fused QKV projection: one lane-dense matmul for all heads (scale pre-folded) ----
    x2 = x_ref[...].reshape(bb * T, E).astype(cdt)
    qkv = jnp.dot(x2, wqkv_ref[...], preferred_element_type=jnp.float32)   # (bb*T, 3*D) f32
    qkv = qkv.reshape(bb, T, 3 * D)

    # additive causal mask (finite large-negative, built once per step from a single iota cmp)
    row = lax.broadcasted_iota(jnp.int32, (T, T), 0)
    col = lax.broadcasted_iota(jnp.int32, (T, T), 1)
    bias = jnp.where(row >= col, 0.0, -1e30).astype(jnp.float32)           # (T, T)

    y = jnp.zeros((bb * T, D), jnp.float32)
    # Static loop over heads; every matmul inside is batched over the bb batch elements.
    for h in range(H):
        q = qkv[:, :, h * hs:(h + 1) * hs].astype(cdt)                     # (bb, T, hs)
        k = qkv[:, :, D + h * hs:D + (h + 1) * hs].astype(cdt)             # (bb, T, hs)
        v = qkv[:, :, 2 * D + h * hs:2 * D + (h + 1) * hs].astype(cdt)     # (bb, T, hs)

        # scores: contract on hs (no k.T), batched over bb
        s = jnp.einsum('bts,bus->btu', q, k,
                       preferred_element_type=jnp.float32)                 # (bb, T, T)
        s = s + bias
        m = jnp.max(s, axis=-1, keepdims=True)
        e = jnp.exp(s - m)
        denom = jnp.sum(e, axis=-1, keepdims=True)
        p = e * pl.reciprocal(denom, approx=True)       # softmax; dropout(p) = identity (eval)

        o_h = jnp.einsum('btu,bus->bts', p.astype(cdt), v,
                         preferred_element_type=jnp.float32)               # (bb, T, hs)

        # output projection accumulated per head — no lane-axis concat
        y = y + jnp.dot(o_h.reshape(bb * T, hs).astype(cdt), wp_ref[h],
                        preferred_element_type=jnp.float32)                # (bb*T, D)

    y = y + bp_ref[...].astype(jnp.float32)                                # + bias (1, D)
    o_ref[...] = y.reshape(bb, T, D).astype(o_ref.dtype)   # dropout(y) = identity (eval)


def _pick_batch_block(B, max_bb=8):
    """Largest divisor of B not exceeding max_bb (denser tiles, fewer grid steps)."""
    for bb in range(min(B, max_bb), 0, -1):
        if B % bb == 0:
            return bb
    return 1


@functools.partial(jax.jit, static_argnames=("batch_block",))
def multi_head_attention(x, wqkv, wp, bp, *, batch_block=None):
    """x: (B, T, E); wqkv: (E, 3*H*hs) with scale folded into Q columns;
    wp: (H, hs, H*hs); bp: (1, H*hs).  Returns (B, T, H*hs)."""
    B, T, E = x.shape
    H, hs, D = wp.shape
    bb = batch_block if batch_block is not None else _pick_batch_block(B)
    assert B % bb == 0

    return pl.pallas_call(
        _mha_kernel,
        out_shape=jax.ShapeDtypeStruct((B, T, D), x.dtype),
        grid=(B // bb,),
        in_specs=[
            pl.BlockSpec((bb, T, E), lambda b: (b, 0, 0)),    # x: bb batches per step
            pl.BlockSpec((E, 3 * D), lambda b: (0, 0)),       # fused QKV weight (resident)
            pl.BlockSpec((H, hs, D), lambda b: (0, 0, 0)),    # proj weight, per-head slabs
            pl.BlockSpec((1, D), lambda b: (0, 0)),           # proj bias
        ],
        out_specs=pl.BlockSpec((bb, T, D), lambda b: (b, 0, 0)),
        # Single independent ("parallel") grid axis over batch blocks; no reduction axis.
        # On v7x, keep >=2 grid steps (choose bb <= B//2) so both TensorCores stay busy.
        compiler_params=pltpu.CompilerParams(
            dimension_semantics=("parallel",)),
    )(x, wqkv, wp, bp)


def prepare_weights(wq, wk, wv, wp, bp, *, mxu_dtype=jnp.float32):
    """Pack per-head weights for the kernel.

    wq/wk/wv: (H, E, hs) (pre-transposed for x @ W); wp: (H*hs, H*hs) (pre-transposed
    for cat @ Wp); bp: (1, H*hs).  Folds the 1/sqrt(hs) score scale into the Q columns
    and casts the matmul weights to `mxu_dtype` (bf16 recommended on v6e/v7x; the
    kernel keeps accumulation and softmax math in f32).
    """
    H, E, hs = wq.shape
    D = H * hs
    scale = 1.0 / (hs ** 0.5)
    to_cols = lambda w: jnp.transpose(w, (1, 0, 2)).reshape(E, D)   # (E, H*hs)
    wqkv = jnp.concatenate([to_cols(wq) * scale, to_cols(wk), to_cols(wv)], axis=-1)
    return wqkv.astype(mxu_dtype), wp.reshape(H, hs, D).astype(mxu_dtype), bp.astype(jnp.float32)


def ref_forward(x, wq, wk, wv, wp, bp):
    """Pure-JAX reference mirroring the PyTorch MultiHead.forward (eval mode)."""
    B, T, E = x.shape
    H, _, hs = wq.shape
    q = jnp.einsum('bte,hes->bhts', x, wq)
    k = jnp.einsum('bte,hes->bhts', x, wk)
    v = jnp.einsum('bte,hes->bhts', x, wv)
    w = jnp.einsum('bhts,bhus->bhtu', q, k) * (1.0 / hs ** 0.5)
    mask = jnp.tril(jnp.ones((T, T), dtype=bool))
    w = jnp.where(mask, w, -jnp.inf)
    p = jax.nn.softmax(w, axis=-1)
    o = jnp.einsum('bhtu,bhus->bhts', p, v)                  # (B, H, T, hs)
    cat = jnp.transpose(o, (0, 2, 1, 3)).reshape(B, T, H * hs)
    return cat @ wp + bp


def init_params(key, n_embed, head_size, n_heads):
    """Deterministic nn.Linear-style init (uniform(-1/sqrt(fan_in), 1/sqrt(fan_in)))."""
    D = n_heads * head_size
    ks = jax.random.split(key, 5)
    bound_e = 1.0 / (n_embed ** 0.5)
    bound_d = 1.0 / (D ** 0.5)
    wq = jax.random.uniform(ks[0], (n_heads, n_embed, head_size), jnp.float32, -bound_e, bound_e)
    wk = jax.random.uniform(ks[1], (n_heads, n_embed, head_size), jnp.float32, -bound_e, bound_e)
    wv = jax.random.uniform(ks[2], (n_heads, n_embed, head_size), jnp.float32, -bound_e, bound_e)
    wp = jax.random.uniform(ks[3], (D, D), jnp.float32, -bound_d, bound_d)
    bp = jax.random.uniform(ks[4], (1, D), jnp.float32, -bound_d, bound_d)
    return wq, wk, wv, wp, bp


if __name__ == "__main__":
    # small shapes consistent with the module
    B, T, E = 2, 8, 32          # batch, block_size, n_embed
    n_heads, head_size = 4, 8   # -> output dim 32
    # dropout_frac is irrelevant in eval mode (identity)

    key = jax.random.PRNGKey(0)
    kx, kp = jax.random.split(key)
    x = jax.random.normal(kx, (B, T, E), dtype=jnp.float32)
    wq, wk, wv, wp, bp = init_params(kp, E, head_size, n_heads)
    expected = ref_forward(x, wq, wk, wv, wp, bp)

    # f32 MXU operands (tight check; pl.reciprocal(approx=True) adds ~2^-12 rel error)
    wqkv32, wp32, bp32 = prepare_weights(wq, wk, wv, wp, bp, mxu_dtype=jnp.float32)
    out = jax.block_until_ready(multi_head_attention(x, wqkv32, wp32, bp32))
    assert out.shape == (B, T, n_heads * head_size)
    assert jnp.allclose(out, expected, atol=5e-3, rtol=5e-3), "f32 mismatch vs reference"

    # bf16 MXU operands (recommended on v6e/v7x); accumulation & softmax stay f32
    wqkv16, wp16, bp16 = prepare_weights(wq, wk, wv, wp, bp, mxu_dtype=jnp.bfloat16)
    out16 = jax.block_until_ready(multi_head_attention(x, wqkv16, wp16, bp16))
    assert jnp.allclose(out16, expected, atol=5e-2, rtol=5e-2), "bf16 mismatch vs reference"

    print("KERNEL_OK")
</pallas_src>

<mosaic_0001>
module attributes {stable_mosaic.version = 11 : i64} {
  func.func @_mha_kernel(%arg0: i32, %arg1: memref<2x8x32xf32, #tpu.memory_space<vmem>>, %arg2: memref<32x96xf32, #tpu.memory_space<vmem>>, %arg3: memref<4x8x32xf32, #tpu.memory_space<vmem>>, %arg4: memref<1x32xf32, #tpu.memory_space<vmem>>, %arg5: memref<2x8x32xf32, #tpu.memory_space<vmem>>) attributes {dimension_semantics = [#tpu.dimension_semantics<parallel>], iteration_bounds = array<i64: 1>, scalar_prefetch = 0 : i64, scratch_operands = 0 : i64, tpu.core_type = #tpu.core_type<tc>, window_params = [{transform_indices = @transform_0, window_bounds = array<i64: 2, 8, 32>}, {pipeline_mode = #tpu.pipeline_mode<synchronous>, transform_indices = @transform_1, window_bounds = array<i64: 32, 96>}, {pipeline_mode = #tpu.pipeline_mode<synchronous>, transform_indices = @transform_2, window_bounds = array<i64: 4, 8, 32>}, {pipeline_mode = #tpu.pipeline_mode<synchronous>, transform_indices = @transform_3, window_bounds = array<i64: 1, 32>}, {transform_indices = @transform_4, window_bounds = array<i64: 2, 8, 32>}]} {
    %c0 = arith.constant 0 : index
    %c0_0 = arith.constant 0 : index
    %c0_1 = arith.constant 0 : index
    %0 = vector.load %arg1[%c0, %c0_0, %c0_1] : memref<2x8x32xf32, #tpu.memory_space<vmem>>, vector<2x8x32xf32>
    %1 = vector.shape_cast %0 : vector<2x8x32xf32> to vector<16x32xf32>
    %c0_2 = arith.constant 0 : index
    %c0_3 = arith.constant 0 : index
    %2 = vector.load %arg2[%c0_2, %c0_3] : memref<32x96xf32, #tpu.memory_space<vmem>>, vector<32x96xf32>
    %cst = arith.constant dense<0.000000e+00> : vector<16x96xf32>
    %3 = tpu.matmul %1, %2, %cst {dimension_numbers = #tpu.dot_dimension_numbers<[1], [0], [0], [1], [0, 0, 1, 1], [], []>} : vector<16x32xf32>, vector<32x96xf32>, vector<16x96xf32> -> vector<16x96xf32>
    %4 = vector.shape_cast %3 : vector<16x96xf32> to vector<2x8x96xf32>
    %5 = tpu.iota {dimensions = array<i32: 0>} : vector<8x8xi32>
    %6 = tpu.iota {dimensions = array<i32: 1>} : vector<8x8xi32>
    %7 = arith.cmpi sge, %5, %6 : vector<8x8xi32>
    %cst_4 = arith.constant 0.000000e+00 : f32
    %cst_5 = arith.constant -1.000000e+30 : f32
    %8 = vector.broadcast %cst_4 : f32 to vector<8x8xf32>
    %9 = vector.broadcast %cst_5 : f32 to vector<8x8xf32>
    %10 = arith.select %7, %8, %9 : vector<8x8xi1>, vector<8x8xf32>
    %cst_6 = arith.constant 0.000000e+00 : f32
    %11 = vector.broadcast %cst_6 : f32 to vector<16x32xf32>
    %12 = vector.extract_strided_slice %4 {offsets = [0, 0, 0], sizes = [2, 8, 8], strides = [1, 1, 1]} : vector<2x8x96xf32> to vector<2x8x8xf32>
    %13 = vector.extract_strided_slice %4 {offsets = [0, 0, 32], sizes = [2, 8, 8], strides = [1, 1, 1]} : vector<2x8x96xf32> to vector<2x8x8xf32>
    %14 = vector.extract_strided_slice %4 {offsets = [0, 0, 64], sizes = [2, 8, 8], strides = [1, 1, 1]} : vector<2x8x96xf32> to vector<2x8x8xf32>
    "tpu.trace_start"() <{level = 10 : i32, message = "bts,bus->btu"}> : () -> ()
    %cst_7 = arith.constant dense<0.000000e+00> : vector<2x8x8xf32>
    %15 = tpu.matmul %12, %13, %cst_7 {dimension_numbers = #tpu.dot_dimension_numbers<[2], [2], [1], [1], [0, 0, 0, 1, 1, 1], [0], [0]>} : vector<2x8x8xf32>, vector<2x8x8xf32>, vector<2x8x8xf32> -> vector<2x8x8xf32>
    "tpu.trace_stop"() : () -> ()
    %16 = vector.shape_cast %10 : vector<8x8xf32> to vector<1x8x8xf32>
    %17 = vector.broadcast %16 : vector<1x8x8xf32> to vector<2x8x8xf32>
    %18 = arith.addf %15, %17 : vector<2x8x8xf32>
    %cst_8 = arith.constant dense<0xFF800000> : vector<2x8xf32>
    %19 = vector.multi_reduction <maximumf>, %18, %cst_8 [2] : vector<2x8x8xf32> to vector<2x8xf32>
    %20 = vector.shape_cast %19 : vector<2x8xf32> to vector<2x8x1xf32>
    %21 = vector.broadcast %20 : vector<2x8x1xf32> to vector<2x8x8xf32>
    %22 = arith.subf %18, %21 : vector<2x8x8xf32>
    %23 = math.exp %22 : vector<2x8x8xf32>
    %cst_9 = arith.constant dense<0.000000e+00> : vector<2x8xf32>
    %24 = vector.multi_reduction <add>, %23, %cst_9 [2] : vector<2x8x8xf32> to vector<2x8xf32>
    %25 = vector.shape_cast %24 : vector<2x8xf32> to vector<2x8x1xf32>
    %26 = tpu.reciprocal %25 {approx = true} : vector<2x8x1xf32> -> vector<2x8x1xf32>
    %27 = vector.broadcast %26 : vector<2x8x1xf32> to vector<2x8x8xf32>
    %28 = arith.mulf %23, %27 : vector<2x8x8xf32>
    "tpu.trace_start"() <{level = 10 : i32, message = "btu,bus->bts"}> : () -> ()
    %cst_10 = arith.constant dense<0.000000e+00> : vector<2x8x8xf32>
    %29 = tpu.matmul %28, %14, %cst_10 {dimension_numbers = #tpu.dot_dimension_numbers<[2], [1], [1], [2], [0, 0, 0, 1, 1, 2], [0], [0]>} : vector<2x8x8xf32>, vector<2x8x8xf32>, vector<2x8x8xf32> -> vector<2x8x8xf32>
    "tpu.trace_stop"() : () -> ()
    %30 = vector.shape_cast %29 : vector<2x8x8xf32> to vector<16x8xf32>
    %c0_11 = arith.constant 0 : index
    %c0_12 = arith.constant 0 : index
    %c0_13 = arith.constant 0 : index
    %31 = vector.load %arg3[%c0_11, %c0_12, %c0_13] : memref<4x8x32xf32, #tpu.memory_space<vmem>>, vector<1x8x32xf32>
    %32 = vector.shape_cast %31 : vector<1x8x32xf32> to vector<8x32xf32>
    %cst_14 = arith.constant dense<0.000000e+00> : vector<16x32xf32>
    %33 = tpu.matmul %30, %32, %cst_14 {dimension_numbers = #tpu.dot_dimension_numbers<[1], [0], [0], [1], [0, 0, 1, 1], [], []>} : vector<16x8xf32>, vector<8x32xf32>, vector<16x32xf32> -> vector<16x32xf32>
    %34 = arith.addf %11, %33 : vector<16x32xf32>
    %35 = vector.extract_strided_slice %4 {offsets = [0, 0, 8], sizes = [2, 8, 8], strides = [1, 1, 1]} : vector<2x8x96xf32> to vector<2x8x8xf32>
    %36 = vector.extract_strided_slice %4 {offsets = [0, 0, 40], sizes = [2, 8, 8], strides = [1, 1, 1]} : vector<2x8x96xf32> to vector<2x8x8xf32>
    %37 = vector.extract_strided_slice %4 {offsets = [0, 0, 72], sizes = [2, 8, 8], strides = [1, 1, 1]} : vector<2x8x96xf32> to vector<2x8x8xf32>
    "tpu.trace_start"() <{level = 10 : i32, message = "bts,bus->btu"}> : () -> ()
    %cst_15 = arith.constant dense<0.000000e+00> : vector<2x8x8xf32>
    %38 = tpu.matmul %35, %36, %cst_15 {dimension_numbers = #tpu.dot_dimension_numbers<[2], [2], [1], [1], [0, 0, 0, 1, 1, 1], [0], [0]>} : vector<2x8x8xf32>, vector<2x8x8xf32>, vector<2x8x8xf32> -> vector<2x8x8xf32>
    "tpu.trace_stop"() : () -> ()
    %39 = vector.shape_cast %10 : vector<8x8xf32> to vector<1x8x8xf32>
    %40 = vector.broadcast %39 : vector<1x8x8xf32> to vector<2x8x8xf32>
    %41 = arith.addf %38, %40 : vector<2x8x8xf32>
    %cst_16 = arith.constant dense<0xFF800000> : vector<2x8xf32>
    %42 = vector.multi_reduction <maximumf>, %41, %cst_16 [2] : vector<2x8x8xf32> to vector<2x8xf32>
    %43 = vector.shape_cast %42 : vector<2x8xf32> to vector<2x8x1xf32>
    %44 = vector.broadcast %43 : vector<2x8x1xf32> to vector<2x8x8xf32>
    %45 = arith.subf %41, %44 : vector<2x8x8xf32>
    %46 = math.exp %45 : vector<2x8x8xf32>
    %cst_17 = arith.constant dense<0.000000e+00> : vector<2x8xf32>
    %47 = vector.multi_reduction <add>, %46, %cst_17 [2] : vector<2x8x8xf32> to vector<2x8xf32>
    %48 = vector.shape_cast %47 : vector<2x8xf32> to vector<2x8x1xf32>
    %49 = tpu.reciprocal %48 {approx = true} : vector<2x8x1xf32> -> vector<2x8x1xf32>
    %50 = vector.broadcast %49 : vector<2x8x1xf32> to vector<2x8x8xf32>
    %51 = arith.mulf %46, %50 : vector<2x8x8xf32>
    "tpu.trace_start"() <{level = 10 : i32, message = "btu,bus->bts"}> : () -> ()
    %cst_18 = arith.constant dense<0.000000e+00> : vector<2x8x8xf32>
    %52 = tpu.matmul %51, %37, %cst_18 {dimension_numbers = #tpu.dot_dimension_numbers<[2], [1], [1], [2], [0, 0, 0, 1, 1, 2], [0], [0]>} : vector<2x8x8xf32>, vector<2x8x8xf32>, vector<2x8x8xf32> -> vector<2x8x8xf32>
    "tpu.trace_stop"() : () -> ()
    %53 = vector.shape_cast %52 : vector<2x8x8xf32> to vector<16x8xf32>
    %c1 = arith.constant 1 : index
    %c0_19 = arith.constant 0 : index
    %c0_20 = arith.constant 0 : index
    %54 = vector.load %arg3[%c1, %c0_19, %c0_20] : memref<4x8x32xf32, #tpu.memory_space<vmem>>, vector<1x8x32xf32>
    %55 = vector.shape_cast %54 : vector<1x8x32xf32> to vector<8x32xf32>
    %cst_21 = arith.constant dense<0.000000e+00> : vector<16x32xf32>
    %56 = tpu.matmul %53, %55, %cst_21 {dimension_numbers = #tpu.dot_dimension_numbers<[1], [0], [0], [1], [0, 0, 1, 1], [], []>} : vector<16x8xf32>, vector<8x32xf32>, vector<16x32xf32> -> vector<16x32xf32>
    %57 = arith.addf %34, %56 : vector<16x32xf32>
    %58 = vector.extract_strided_slice %4 {offsets = [0, 0, 16], sizes = [2, 8, 8], strides = [1, 1, 1]} : vector<2x8x96xf32> to vector<2x8x8xf32>
    %59 = vector.extract_strided_slice %4 {offsets = [0, 0, 48], sizes = [2, 8, 8], strides = [1, 1, 1]} : vector<2x8x96xf32> to vector<2x8x8xf32>
    %60 = vector.extract_strided_slice %4 {offsets = [0, 0, 80], sizes = [2, 8, 8], strides = [1, 1, 1]} : vector<2x8x96xf32> to vector<2x8x8xf32>
    "tpu.trace_start"() <{level = 10 : i32, message = "bts,bus->btu"}> : () -> ()
    %cst_22 = arith.constant dense<0.000000e+00> : vector<2x8x8xf32>
    %61 = tpu.matmul %58, %59, %cst_22 {dimension_numbers = #tpu.dot_dimension_numbers<[2], [2], [1], [1], [0, 0, 0, 1, 1, 1], [0], [0]>} : vector<2x8x8xf32>, vector<2x8x8xf32>, vector<2x8x8xf32> -> vector<2x8x8xf32>
    "tpu.trace_stop"() : () -> ()
    %62 = vector.shape_cast %10 : vector<8x8xf32> to vector<1x8x8xf32>
    %63 = vector.broadcast %62 : vector<1x8x8xf32> to vector<2x8x8xf32>
    %64 = arith.addf %61, %63 : vector<2x8x8xf32>
    %cst_23 = arith.constant dense<0xFF800000> : vector<2x8xf32>
    %65 = vector.multi_reduction <maximumf>, %64, %cst_23 [2] : vector<2x8x8xf32> to vector<2x8xf32>
    %66 = vector.shape_cast %65 : vector<2x8xf32> to vector<2x8x1xf32>
    %67 = vector.broadcast %66 : vector<2x8x1xf32> to vector<2x8x8xf32>
    %68 = arith.subf %64, %67 : vector<2x8x8xf32>
    %69 = math.exp %68 : vector<2x8x8xf32>
    %cst_24 = arith.constant dense<0.000000e+00> : vector<2x8xf32>
    %70 = vector.multi_reduction <add>, %69, %cst_24 [2] : vector<2x8x8xf32> to vector<2x8xf32>
    %71 = vector.shape_cast %70 : vector<2x8xf32> to vector<2x8x1xf32>
    %72 = tpu.reciprocal %71 {approx = true} : vector<2x8x1xf32> -> vector<2x8x1xf32>
    %73 = vector.broadcast %72 : vector<2x8x1xf32> to vector<2x8x8xf32>
    %74 = arith.mulf %69, %73 : vector<2x8x8xf32>
    "tpu.trace_start"() <{level = 10 : i32, message = "btu,bus->bts"}> : () -> ()
    %cst_25 = arith.constant dense<0.000000e+00> : vector<2x8x8xf32>
    %75 = tpu.matmul %74, %60, %cst_25 {dimension_numbers = #tpu.dot_dimension_numbers<[2], [1], [1], [2], [0, 0, 0, 1, 1, 2], [0], [0]>} : vector<2x8x8xf32>, vector<2x8x8xf32>, vector<2x8x8xf32> -> vector<2x8x8xf32>
    "tpu.trace_stop"() : () -> ()
    %76 = vector.shape_cast %75 : vector<2x8x8xf32> to vector<16x8xf32>
    %c2 = arith.constant 2 : index
    %c0_26 = arith.constant 0 : index
    %c0_27 = arith.constant 0 : index
    %77 = vector.load %arg3[%c2, %c0_26, %c0_27] : memref<4x8x32xf32, #tpu.memory_space<vmem>>, vector<1x8x32xf32>
    %78 = vector.shape_cast %77 : vector<1x8x32xf32> to vector<8x32xf32>
    %cst_28 = arith.constant dense<0.000000e+00> : vector<16x32xf32>
    %79 = tpu.matmul %76, %78, %cst_28 {dimension_numbers = #tpu.dot_dimension_numbers<[1], [0], [0], [1], [0, 0, 1, 1], [], []>} : vector<16x8xf32>, vector<8x32xf32>, vector<16x32xf32> -> vector<16x32xf32>
    %80 = arith.addf %57, %79 : vector<16x32xf32>
    %81 = vector.extract_strided_slice %4 {offsets = [0, 0, 24], sizes = [2, 8, 8], strides = [1, 1, 1]} : vector<2x8x96xf32> to vector<2x8x8xf32>
    %82 = vector.extract_strided_slice %4 {offsets = [0, 0, 56], sizes = [2, 8, 8], strides = [1, 1, 1]} : vector<2x8x96xf32> to vector<2x8x8xf32>
    %83 = vector.extract_strided_slice %4 {offsets = [0, 0, 88], sizes = [2, 8, 8], strides = [1, 1, 1]} : vector<2x8x96xf32> to vector<2x8x8xf32>
    "tpu.trace_start"() <{level = 10 : i32, message = "bts,bus->btu"}> : () -> ()
    %cst_29 = arith.constant dense<0.000000e+00> : vector<2x8x8xf32>
    %84 = tpu.matmul %81, %82, %cst_29 {dimension_numbers = #tpu.dot_dimension_numbers<[2], [2], [1], [1], [0, 0, 0, 1, 1, 1], [0], [0]>} : vector<2x8x8xf32>, vector<2x8x8xf32>, vector<2x8x8xf32> -> vector<2x8x8xf32>
    "tpu.trace_stop"() : () -> ()
    %85 = vector.shape_cast %10 : vector<8x8xf32> to vector<1x8x8xf32>
    %86 = vector.broadcast %85 : vector<1x8x8xf32> to vector<2x8x8xf32>
    %87 = arith.addf %84, %86 : vector<2x8x8xf32>
    %cst_30 = arith.constant dense<0xFF800000> : vector<2x8xf32>
    %88 = vector.multi_reduction <maximumf>, %87, %cst_30 [2] : vector<2x8x8xf32> to vector<2x8xf32>
    %89 = vector.shape_cast %88 : vector<2x8xf32> to vector<2x8x1xf32>
    %90 = vector.broadcast %89 : vector<2x8x1xf32> to vector<2x8x8xf32>
    %91 = arith.subf %87, %90 : vector<2x8x8xf32>
    %92 = math.exp %91 : vector<2x8x8xf32>
    %cst_31 = arith.constant dense<0.000000e+00> : vector<2x8xf32>
    %93 = vector.multi_reduction <add>, %92, %cst_31 [2] : vector<2x8x8xf32> to vector<2x8xf32>
    %94 = vector.shape_cast %93 : vector<2x8xf32> to vector<2x8x1xf32>
    %95 = tpu.reciprocal %94 {approx = true} : vector<2x8x1xf32> -> vector<2x8x1xf32>
    %96 = vector.broadcast %95 : vector<2x8x1xf32> to vector<2x8x8xf32>
    %97 = arith.mulf %92, %96 : vector<2x8x8xf32>
    "tpu.trace_start"() <{level = 10 : i32, message = "btu,bus->bts"}> : () -> ()
    %cst_32 = arith.constant dense<0.000000e+00> : vector<2x8x8xf32>
    %98 = tpu.matmul %97, %83, %cst_32 {dimension_numbers = #tpu.dot_dimension_numbers<[2], [1], [1], [2], [0, 0, 0, 1, 1, 2], [0], [0]>} : vector<2x8x8xf32>, vector<2x8x8xf32>, vector<2x8x8xf32> -> vector<2x8x8xf32>
    "tpu.trace_stop"() : () -> ()
    %99 = vector.shape_cast %98 : vector<2x8x8xf32> to vector<16x8xf32>
    %c3 = arith.constant 3 : index
    %c0_33 = arith.constant 0 : index
    %c0_34 = arith.constant 0 : index
    %100 = vector.load %arg3[%c3, %c0_33, %c0_34] : memref<4x8x32xf32, #tpu.memory_space<vmem>>, vector<1x8x32xf32>
    %101 = vector.shape_cast %100 : vector<1x8x32xf32> to vector<8x32xf32>
    %cst_35 = arith.constant dense<0.000000e+00> : vector<16x32xf32>
    %102 = tpu.matmul %99, %101, %cst_35 {dimension_numbers = #tpu.dot_dimension_numbers<[1], [0], [0], [1], [0, 0, 1, 1], [], []>} : vector<16x8xf32>, vector<8x32xf32>, vector<16x32xf32> -> vector<16x32xf32>
    %103 = arith.addf %80, %102 : vector<16x32xf32>
    %c0_36 = arith.constant 0 : index
    %c0_37 = arith.constant 0 : index
    %104 = vector.load %arg4[%c0_36, %c0_37] : memref<1x32xf32, #tpu.memory_space<vmem>>, vector<1x32xf32>
    %105 = vector.broadcast %104 : vector<1x32xf32> to vector<16x32xf32>
    %106 = arith.addf %103, %105 : vector<16x32xf32>
    %107 = vector.shape_cast %106 : vector<16x32xf32> to vector<2x8x32xf32>
    %c0_38 = arith.constant 0 : index
    %c0_39 = arith.constant 0 : index
    %c0_40 = arith.constant 0 : index
    %108 = vector.load %arg5[%c0_38, %c0_39, %c0_40] : memref<2x8x32xf32, #tpu.memory_space<vmem>>, vector<2x8x32xf32>
    tpu.vector_store %arg5[%c0_38, %c0_39, %c0_40], %107 {strides = array<i32>} : memref<2x8x32xf32, #tpu.memory_space<vmem>>, vector<2x8x32xf32>,
    return
  }
  func.func @transform_0(%arg0: i32) -> (i32, i32, i32) {
    %c0_i32 = arith.constant 0 : i32
    %c0_i32_0 = arith.constant 0 : i32
    %c0_i32_1 = arith.constant 0 : i32
    return %arg0, %c0_i32, %c0_i32_0 : i32, i32, i32
  }
  func.func @transform_1(%arg0: i32) -> (i32, i32) {
    %c0_i32 = arith.constant 0 : i32
    %c0_i32_0 = arith.constant 0 : i32
    %c0_i32_1 = arith.constant 0 : i32
    return %c0_i32, %c0_i32_0 : i32, i32
  }
  func.func @transform_2(%arg0: i32) -> (i32, i32, i32) {
    %c0_i32 = arith.constant 0 : i32
    %c0_i32_0 = arith.constant 0 : i32
    %c0_i32_1 = arith.constant 0 : i32
    %c0_i32_2 = arith.constant 0 : i32
    return %c0_i32, %c0_i32_0, %c0_i32_1 : i32, i32, i32
  }
  func.func @transform_3(%arg0: i32) -> (i32, i32) {
    %c0_i32 = arith.constant 0 : i32
    %c0_i32_0 = arith.constant 0 : i32
    %c0_i32_1 = arith.constant 0 : i32
    return %c0_i32, %c0_i32_0 : i32, i32
  }
  func.func @transform_4(%arg0: i32) -> (i32, i32, i32) {
    %c0_i32 = arith.constant 0 : i32
    %c0_i32_0 = arith.constant 0 : i32
    %c0_i32_1 = arith.constant 0 : i32
    return %arg0, %c0_i32, %c0_i32_0 : i32, i32, i32
  }
}

</mosaic_0001>

<llo_original>
// kernel: multi_head_attention.1
$region0: #{multi_head_attention.1}
  #allocation0 [shape = 'u32[]', space=smem, size = 0x4, offset = 0x4, fixed_abs, tag = 'smem constant byte address 0x4 - core index']
  #allocation1 [shape = 'u32[144,128]{1,0:T(1,128)}', space=vmem, size = 0x12000, scoped, tag = 'internal scratch']
  %s0 = inlined_call_operand.hbm [shape: f32[2,8,32], index: 0, kind: input, shape index: {}]
  %s1 = inlined_call_operand.hbm [shape: f32[32,96], index: 1, kind: input, shape index: {}]
  %s2 = inlined_call_operand.hbm [shape: f32[4,8,32], index: 2, kind: input, shape index: {}]
  %s3 = inlined_call_operand.vmem [shape: f32[1,32], index: 3, kind: input, shape index: {}]
  %s4 = inlined_call_operand.hbm [shape: f32[2,8,32], index: 4, kind: output, shape index: {}]
  %s5 = sld [smem:[#allocation0]]
  $region38: #{multi_head_attention.1} parent=0
    _
  %s7 = ssub.s32 1, %s5
  %s8 = scalar_select 0, %s7, %s5
  $region1: #{multi_head_attention.1} parent=0
    #allocation2 [shape = 'u8[8192]{0}', space=vmem, size = 0x2000, scoped, tag = 'input window, operand 0, single buffered']
    #allocation3 [shape = 's32[1]{0}', space=sflag, size = 0x4, scoped, tag = 'scoped memory for multi_head_attention.1']
    #allocation4 [shape = 's32[1]{0}', space=sflag, size = 0x4, scoped, tag = 'scoped memory for multi_head_attention.1']
    #allocation5 [shape = 'u8[16384]{0}', space=vmem, size = 0x4000, scoped, tag = 'input window, operand 1, single buffered']
    #allocation6 [shape = 's32[1]{0}', space=sflag, size = 0x4, scoped, tag = 'scoped memory for multi_head_attention.1']
    #allocation7 [shape = 'u8[16384]{0}', space=vmem, size = 0x4000, scoped, tag = 'input window, operand 2, single buffered']
    #allocation8 [shape = 'u8[8192]{0}', space=vmem, size = 0x2000, scoped, tag = 'output window, operand 0, single buffered']
    %9 = vsyncpa [#allocation3], 0
    %10 = vsyncpa [#allocation6], 0
    %11 = vsyncpa [#allocation4], 0
    // Predicated region
    $region2: #{multi_head_attention.1} parent=1 // pred_check
      _
    $region3: #{multi_head_attention.1} parent=1 // pred_check_branch
      %13 = sbr.rel (0) target = $region5
    $region4: #{multi_head_attention.1} parent=1 // pred_region
      %s15 = ssub.s32 256, 256
      %16 = vsyncadd [#allocation3], %s15
      %s17 = sshll.u32 [#allocation2], 4
      %s18 = int_to_ptr.vmem [resolvable:$true] %s17
      %23 = dma.hbm_to_vmem [thread:$0]  %s0, 256, %s18, [#allocation3], 128, 128, 8
    $region5: #{multi_head_attention.1} parent=1 // pred_fallthru
      _
    // Predicated region
    $region6: #{multi_head_attention.1} parent=1 // pred_check
      _
    $region7: #{multi_head_attention.1} parent=1 // pred_check_branch
      %25 = sbr.rel (0) target = $region9
    $region8: #{multi_head_attention.1} parent=1 // pred_region
      %s27 = ssub.s32 512, 512
      %28 = vsyncadd [#allocation6], %s27
      %s29 = sshll.u32 [#allocation5], 4
      %s30 = int_to_ptr.vmem [resolvable:$true] %s29
      %35 = dma.hbm_to_vmem [thread:$0]  %s1, 512, %s30, [#allocation6], 128, 128, 8
    $region9: #{multi_head_attention.1} parent=1 // pred_fallthru
      _
    // Predicated region
    $region10: #{multi_head_attention.1} parent=1 // pred_check
      _
    $region11: #{multi_head_attention.1} parent=1 // pred_check_branch
      %37 = sbr.rel (0) target = $region13
    $region12: #{multi_head_attention.1} parent=1 // pred_region
      %s39 = ssub.s32 512, 512
      %40 = vsyncadd [#allocation6], %s39
      %s41 = sshll.u32 [#allocation7], 4
      %s42 = int_to_ptr.vmem [resolvable:$true] %s41
      %47 = dma.hbm_to_vmem [thread:$0]  %s2, 512, %s42, [#allocation6], 128, 128, 8
    $region13: #{multi_head_attention.1} parent=1 // pred_fallthru
      _
    // Predicated region
    $region14: #{multi_head_attention.1} parent=1 // pred_check
      _
    $region15: #{multi_head_attention.1} parent=1 // pred_check_branch
      %49 = sbr.rel (0) target = $region17
    $region16: #{multi_head_attention.1} parent=1 // pred_region
      _
    $region17: #{multi_head_attention.1} parent=1 // pred_fallthru
      _
    // Predicated region
    $region18: #{multi_head_attention.1} parent=1 // pred_check
      _
    $region19: #{multi_head_attention.1} parent=1 // pred_check_branch
      %51 = sbr.rel (0) target = $region21
    $region20: #{multi_head_attention.1} parent=1 // pred_region
      %52 = dma.done [#allocation3], 256
    $region21: #{multi_head_attention.1} parent=1 // pred_fallthru
      _
    // Predicated region
    $region22: #{multi_head_attention.1} parent=1 // pred_check
      _
    $region23: #{multi_head_attention.1} parent=1 // pred_check_branch
      %54 = sbr.rel (0) target = $region25
    $region24: #{multi_head_attention.1} parent=1 // pred_region
      %55 = dma.done [#allocation6], 512
    $region25: #{multi_head_attention.1} parent=1 // pred_fallthru
      _
    // Predicated region
    $region26: #{multi_head_attention.1} parent=1 // pred_check
      _
    $region27: #{multi_head_attention.1} parent=1 // pred_check_branch
      %57 = sbr.rel (0) target = $region29
    $region28: #{multi_head_attention.1} parent=1 // pred_region
      %58 = dma.done [#allocation6], 512
    $region29: #{multi_head_attention.1} parent=1 // pred_fallthru
      _
    %v59 = vld [vmem:[#allocation2] sm:$0xff]
    %v60 = vld [vmem:[#allocation2 + $0x8] sm:$0xff]
    %v61 = vld [vmem:[#allocation5] sm:$0xff]
    %v62 = vld [vmem:[#allocation5 + $0x8] sm:$0xff]
    %v63 = vld [vmem:[#allocation5 + $0x10] sm:$0xff]
    %v64 = vld [vmem:[#allocation5 + $0x18] sm:$0xff]
    %vm65 = vcmask 261120
    %v67 = vsel %vm65, %v59, 0
    %v70 = vsel %vm65, %v60, 0
    %72 = vmatprep.subr.mxu0 0.0
    %73 = vmatpush1.msra.mxu0 0.0
    %74 = vmatprep.subr.mxu0 0.0
    %75 = vmatpush1.msra.mxu0 0.0
    %76 = vmatprep.subr.mxu0 0.0
    %77 = vmatpush1.msra.mxu0 0.0
    %78 = vmatprep.subr.mxu0 0.0
    %79 = vmatpush1.msra.mxu0 0.0
    %80 = vmatprep.subr.mxu0 0.0
    %81 = vmatpush1.msra.mxu0 0.0
    %82 = vmatprep.subr.mxu0 0.0
    %83 = vmatpush1.msra.mxu0 0.0
    %84 = vmatprep.subr.mxu0 0.0
    %85 = vmatpush1.msra.mxu0 0.0
    %86 = vmatprep.subr.mxu0 0.0
    %87 = vmatpush1.msra.mxu0 0.0
    %88 = vmatprep.subr.mxu0 0.0
    %89 = vmatpush1.msra.mxu0 0.0
    %90 = vmatprep.subr.mxu0 0.0
    %91 = vmatpush1.msra.mxu0 0.0
    %92 = vmatprep.subr.mxu0 0.0
    %93 = vmatpush1.msra.mxu0 0.0
    %94 = vmatprep.subr.mxu0 0.0
    %95 = vmatpush1.msra.mxu0 0.0
    %96 = vmatprep.subr.mxu0 0.0
    %97 = vmatpush1.msra.mxu0 %v64
    %98 = vmatprep.subr.mxu0 0.0
    %99 = vmatpush1.msra.mxu0 %v63
    %100 = vmatprep.subr.mxu0 0.0
    %101 = vmatpush1.msra.mxu0 %v62
    %102 = vmatprep.subr.mxu0 0.0
    %103 = vmatpush1.msra.mxu0 %v61
    %104 = vmatprep.subr.mxu0 0.0
    %105 = vmatpush2.msra.mxu0 0.0
    %106 = vmatprep.subr.mxu0 0.0
    %107 = vmatpush2.msra.mxu0 0.0
    %108 = vmatprep.subr.mxu0 0.0
    %109 = vmatpush2.msra.mxu0 0.0
    %110 = vmatprep.subr.mxu0 0.0
    %111 = vmatpush2.msra.mxu0 0.0
    %112 = vmatprep.subr.mxu0 0.0
    %113 = vmatpush2.msra.mxu0 0.0
    %114 = vmatprep.subr.mxu0 0.0
    %115 = vmatpush2.msra.mxu0 0.0
    %116 = vmatprep.subr.mxu0 0.0
    %117 = vmatpush2.msra.mxu0 0.0
    %118 = vmatprep.subr.mxu0 0.0
    %119 = vmatpush2.msra.mxu0 0.0
    %120 = vmatprep.subr.mxu0 0.0
    %121 = vmatpush2.msra.mxu0 0.0
    %122 = vmatprep.subr.mxu0 0.0
    %123 = vmatpush2.msra.mxu0 0.0
    %124 = vmatprep.subr.mxu0 0.0
    %125 = vmatpush2.msra.mxu0 0.0
    %126 = vmatprep.subr.mxu0 0.0
    %127 = vmatpush2.msra.mxu0 0.0
    %128 = vmatprep.subr.mxu0 0.0
    %129 = vmatpush2.msra.mxu0 0.0
    %130 = vmatprep.subr.mxu0 0.0
    %131 = vmatpush2.msra.mxu0 0.0
    %132 = vmatprep.subr.mxu0 0.0
    %133 = vmatpush2.msra.mxu0 0.0
    %134 = vmatprep.subr.mxu0 0.0
    %135 = vmatpush2.msra.mxu0 0.0
    %136 = vmatprep.mubr.f32.mxu0 0.0
    %137 = vmatmul.mubr.f32.gmra.mxu0 %v67
    %v138 = vpop.f32.mrf.mxu0
    %v139 = vadd.f32 0.0, %v138
    %v140 = vpop.f32.mrf.mxu0
    %141 = vmatprep.mubr.f32.mxu0 0.0
    %142 = vmatmul.mubr.f32.gmra.mxu0 %v70
    %v143 = vpop.f32.mrf.mxu0
    %v144 = vadd.f32 0.0, %v143
    %v145 = vpop.f32.mrf.mxu0
    %146 = vdwg.mxu0
    %v147 = vlaneseq
    %v148 = vshrl.u32 %v147, 7
    %v149 = vlaneseq
    %v150 = vand.u32 %v149, 127
    %vm151 = vcmp.ge.s32.totalorder %v148, %v150
    %v152 = vsel %vm151, 0.0, -1e+30
    %154 = vrot.lane.b32.xlu0 %v139, 96
    %v155 = vpop.permute.xlu0 %154
    %vm156 = vcmask 64512
    %v157 = vsel %vm156, %v139, 0
    %v159 = vsel %vm156, %v155, 0
    %161 = vmatprep.subr.mxu0 0.0
    %162 = vmatpush1.xpose.msra.mxu0 0.0
    %163 = vmatprep.subr.mxu0 0.0
    %164 = vmatpush1.xpose.msra.mxu0 0.0
    %165 = vmatprep.subr.mxu0 0.0
    %166 = vmatpush1.xpose.msra.mxu0 0.0
    %167 = vmatprep.subr.mxu0 0.0
    %168 = vmatpush1.xpose.msra.mxu0 0.0
    %169 = vmatprep.subr.mxu0 0.0
    %170 = vmatpush1.xpose.msra.mxu0 0.0
    %171 = vmatprep.subr.mxu0 0.0
    %172 = vmatpush1.xpose.msra.mxu0 0.0
    %173 = vmatprep.subr.mxu0 0.0
    %174 = vmatpush1.xpose.msra.mxu0 0.0
    %175 = vmatprep.subr.mxu0 0.0
    %176 = vmatpush1.xpose.msra.mxu0 0.0
    %177 = vmatprep.subr.mxu0 0.0
    %178 = vmatpush1.xpose.msra.mxu0 0.0
    %179 = vmatprep.subr.mxu0 0.0
    %180 = vmatpush1.xpose.msra.mxu0 0.0
    %181 = vmatprep.subr.mxu0 0.0
    %182 = vmatpush1.xpose.msra.mxu0 0.0
    %183 = vmatprep.subr.mxu0 0.0
    %184 = vmatpush1.xpose.msra.mxu0 0.0
    %185 = vmatprep.subr.mxu0 0.0
    %186 = vmatpush1.xpose.msra.mxu0 0.0
    %187 = vmatprep.subr.mxu0 0.0
    %188 = vmatpush1.xpose.msra.mxu0 0.0
    %189 = vmatprep.subr.mxu0 0.0
    %190 = vmatpush1.xpose.msra.mxu0 0.0
    %191 = vmatprep.subr.mxu0 0.0
    %192 = vmatpush1.xpose.msra.mxu0 %v159
    %193 = vmatprep.subr.mxu0 0.0
    %194 = vmatpush2.xpose.msra.mxu0 0.0
    %195 = vmatprep.subr.mxu0 0.0
    %196 = vmatpush2.xpose.msra.mxu0 0.0
    %197 = vmatprep.subr.mxu0 0.0
    %198 = vmatpush2.xpose.msra.mxu0 0.0
    %199 = vmatprep.subr.mxu0 0.0
    %200 = vmatpush2.xpose.msra.mxu0 0.0
    %201 = vmatprep.subr.mxu0 0.0
    %202 = vmatpush2.xpose.msra.mxu0 0.0
    %203 = vmatprep.subr.mxu0 0.0
    %204 = vmatpush2.xpose.msra.mxu0 0.0
    %205 = vmatprep.subr.mxu0 0.0
    %206 = vmatpush2.xpose.msra.mxu0 0.0
    %207 = vmatprep.subr.mxu0 0.0
    %208 = vmatpush2.xpose.msra.mxu0 0.0
    %209 = vmatprep.subr.mxu0 0.0
    %210 = vmatpush2.xpose.msra.mxu0 0.0
    %211 = vmatprep.subr.mxu0 0.0
    %212 = vmatpush2.xpose.msra.mxu0 0.0
    %213 = vmatprep.subr.mxu0 0.0
    %214 = vmatpush2.xpose.msra.mxu0 0.0
    %215 = vmatprep.subr.mxu0 0.0
    %216 = vmatpush2.xpose.msra.mxu0 0.0
    %217 = vmatprep.subr.mxu0 0.0
    %218 = vmatpush2.xpose.msra.mxu0 0.0
    %219 = vmatprep.subr.mxu0 0.0
    %220 = vmatpush2.xpose.msra.mxu0 0.0
    %221 = vmatprep.subr.mxu0 0.0
    %222 = vmatpush2.xpose.msra.mxu0 0.0
    %223 = vmatprep.subr.mxu0 0.0
    %224 = vmatpush2.xpose.msra.mxu0 0.0
    %225 = vmatprep.mubr.f32.mxu0 0.0
    %226 = vmatmul.mubr.f32.gmra.mxu0 %v157
    %v227 = vpop.f32.mrf.mxu0
    %v228 = vadd.f32 %v152, %v227
    %v229 = vpop.f32.mrf.mxu0
    %230 = vdwg.mxu0
    %232 = vrot.lane.b32.xlu0 %v144, 96
    %v233 = vpop.permute.xlu0 %232
    %v234 = vsel %vm156, %v144, 0
    %v236 = vsel %vm156, %v233, 0
    %238 = vmatprep.subr.mxu0 0.0
    %239 = vmatpush1.xpose.msra.mxu0 0.0
    %240 = vmatprep.subr.mxu0 0.0
    %241 = vmatpush1.xpose.msra.mxu0 0.0
    %242 = vmatprep.subr.mxu0 0.0
    %243 = vmatpush1.xpose.msra.mxu0 0.0
    %244 = vmatprep.subr.mxu0 0.0
    %245 = vmatpush1.xpose.msra.mxu0 0.0
    %246 = vmatprep.subr.mxu0 0.0
    %247 = vmatpush1.xpose.msra.mxu0 0.0
    %248 = vmatprep.subr.mxu0 0.0
    %249 = vmatpush1.xpose.msra.mxu0 0.0
    %250 = vmatprep.subr.mxu0 0.0
    %251 = vmatpush1.xpose.msra.mxu0 0.0
    %252 = vmatprep.subr.mxu0 0.0
    %253 = vmatpush1.xpose.msra.mxu0 0.0
    %254 = vmatprep.subr.mxu0 0.0
    %255 = vmatpush1.xpose.msra.mxu0 0.0
    %256 = vmatprep.subr.mxu0 0.0
    %257 = vmatpush1.xpose.msra.mxu0 0.0
    %258 = vmatprep.subr.mxu0 0.0
    %259 = vmatpush1.xpose.msra.mxu0 0.0
    %260 = vmatprep.subr.mxu0 0.0
    %261 = vmatpush1.xpose.msra.mxu0 0.0
    %262 = vmatprep.subr.mxu0 0.0
    %263 = vmatpush1.xpose.msra.mxu0 0.0
    %264 = vmatprep.subr.mxu0 0.0
    %265 = vmatpush1.xpose.msra.mxu0 0.0
    %266 = vmatprep.subr.mxu0 0.0
    %267 = vmatpush1.xpose.msra.mxu0 0.0
    %268 = vmatprep.subr.mxu0 0.0
    %269 = vmatpush1.xpose.msra.mxu0 %v236
    %270 = vmatprep.subr.mxu0 0.0
    %271 = vmatpush2.xpose.msra.mxu0 0.0
    %272 = vmatprep.subr.mxu0 0.0
    %273 = vmatpush2.xpose.msra.mxu0 0.0
    %274 = vmatprep.subr.mxu0 0.0
    %275 = vmatpush2.xpose.msra.mxu0 0.0
    %276 = vmatprep.subr.mxu0 0.0
    %277 = vmatpush2.xpose.msra.mxu0 0.0
    %278 = vmatprep.subr.mxu0 0.0
    %279 = vmatpush2.xpose.msra.mxu0 0.0
    %280 = vmatprep.subr.mxu0 0.0
    %281 = vmatpush2.xpose.msra.mxu0 0.0
    %282 = vmatprep.subr.mxu0 0.0
    %283 = vmatpush2.xpose.msra.mxu0 0.0
    %284 = vmatprep.subr.mxu0 0.0
    %285 = vmatpush2.xpose.msra.mxu0 0.0
    %286 = vmatprep.subr.mxu0 0.0
    %287 = vmatpush2.xpose.msra.mxu0 0.0
    %288 = vmatprep.subr.mxu0 0.0
    %289 = vmatpush2.xpose.msra.mxu0 0.0
    %290 = vmatprep.subr.mxu0 0.0
    %291 = vmatpush2.xpose.msra.mxu0 0.0
    %292 = vmatprep.subr.mxu0 0.0
    %293 = vmatpush2.xpose.msra.mxu0 0.0
    %294 = vmatprep.subr.mxu0 0.0
    %295 = vmatpush2.xpose.msra.mxu0 0.0
    %296 = vmatprep.subr.mxu0 0.0
    %297 = vmatpush2.xpose.msra.mxu0 0.0
    %298 = vmatprep.subr.mxu0 0.0
    %299 = vmatpush2.xpose.msra.mxu0 0.0
    %300 = vmatprep.subr.mxu0 0.0
    %301 = vmatpush2.xpose.msra.mxu0 0.0
    %302 = vmatprep.mubr.f32.mxu0 0.0
    %303 = vmatmul.mubr.f32.gmra.mxu0 %v234
    %v304 = vpop.f32.mrf.mxu0
    %v305 = vadd.f32 %v152, %v304
    %v306 = vpop.f32.mrf.mxu0
    %307 = vdwg.mxu0
    %v308 = vsel %vm156, %v228, -inf
    %309 = vmax.xlane.f32.xlu0 %v308
    %v310 = vpop.xlane.xlu0 %309
    %v311 = vsel %vm156, %v305, -inf
    %312 = vmax.xlane.f32.xlu0 %v311
    %v313 = vpop.xlane.xlu0 %312
    %v314 = vsub.f32 %v228, %v310
    %v315 = vsub.f32 %v305, %v313
    %v316 = vmul.f32 %v314, 1.442695
    %v317 = vpow.pop %v316
    %v318 = vmul.f32 %v315, 1.442695
    %v319 = vpow.pop %v318
    %v320 = vsel %vm156, %v317, 0.0
    %321 = vadd.xlane.f32.xlu0 %v320
    %v322 = vpop.xlane.xlu0 %321
    %v323 = vsel %vm156, %v319, 0.0
    %324 = vadd.xlane.f32.xlu0 %v323
    %v325 = vpop.xlane.xlu0 %324
    %v326 = vrcp.pop %v322
    %v327 = vrcp.pop %v325
    %v328 = vmul.f32 %v317, %v326
    %v329 = vmul.f32 %v319, %v327
    %330 = vrot.lane.b32.xlu0 %v139, 64
    %v331 = vpop.permute.xlu0 %330
    %v334 = vsel %vm156, %v328, 0
    %336 = vmatprep.subr.mxu0 0.0
    %337 = vmatpush1.msra.mxu0 0.0
    %338 = vmatprep.subr.mxu0 0.0
    %339 = vmatpush1.msra.mxu0 0.0
    %340 = vmatprep.subr.mxu0 0.0
    %341 = vmatpush1.msra.mxu0 0.0
    %342 = vmatprep.subr.mxu0 0.0
    %343 = vmatpush1.msra.mxu0 0.0
    %344 = vmatprep.subr.mxu0 0.0
    %345 = vmatpush1.msra.mxu0 0.0
    %346 = vmatprep.subr.mxu0 0.0
    %347 = vmatpush1.msra.mxu0 0.0
    %348 = vmatprep.subr.mxu0 0.0
    %349 = vmatpush1.msra.mxu0 0.0
    %350 = vmatprep.subr.mxu0 0.0
    %351 = vmatpush1.msra.mxu0 0.0
    %352 = vmatprep.subr.mxu0 0.0
    %353 = vmatpush1.msra.mxu0 0.0
    %354 = vmatprep.subr.mxu0 0.0
    %355 = vmatpush1.msra.mxu0 0.0
    %356 = vmatprep.subr.mxu0 0.0
    %357 = vmatpush1.msra.mxu0 0.0
    %358 = vmatprep.subr.mxu0 0.0
    %359 = vmatpush1.msra.mxu0 0.0
    %360 = vmatprep.subr.mxu0 0.0
    %361 = vmatpush1.msra.mxu0 0.0
    %362 = vmatprep.subr.mxu0 0.0
    %363 = vmatpush1.msra.mxu0 0.0
    %364 = vmatprep.subr.mxu0 0.0
    %365 = vmatpush1.msra.mxu0 0.0
    %366 = vmatprep.subr.mxu0 0.0
    %367 = vmatpush1.msra.mxu0 %v331
    %368 = vmatprep.subr.mxu0 0.0
    %369 = vmatpush2.msra.mxu0 0.0
    %370 = vmatprep.subr.mxu0 0.0
    %371 = vmatpush2.msra.mxu0 0.0
    %372 = vmatprep.subr.mxu0 0.0
    %373 = vmatpush2.msra.mxu0 0.0
    %374 = vmatprep.subr.mxu0 0.0
    %375 = vmatpush2.msra.mxu0 0.0
    %376 = vmatprep.subr.mxu0 0.0
    %377 = vmatpush2.msra.mxu0 0.0
    %378 = vmatprep.subr.mxu0 0.0
    %379 = vmatpush2.msra.mxu0 0.0
    %380 = vmatprep.subr.mxu0 0.0
    %381 = vmatpush2.msra.mxu0 0.0
    %382 = vmatprep.subr.mxu0 0.0
    %383 = vmatpush2.msra.mxu0 0.0
    %384 = vmatprep.subr.mxu0 0.0
    %385 = vmatpush2.msra.mxu0 0.0
    %386 = vmatprep.subr.mxu0 0.0
    %387 = vmatpush2.msra.mxu0 0.0
    %388 = vmatprep.subr.mxu0 0.0
    %389 = vmatpush2.msra.mxu0 0.0
    %390 = vmatprep.subr.mxu0 0.0
    %391 = vmatpush2.msra.mxu0 0.0
    %392 = vmatprep.subr.mxu0 0.0
    %393 = vmatpush2.msra.mxu0 0.0
    %394 = vmatprep.subr.mxu0 0.0
    %395 = vmatpush2.msra.mxu0 0.0
    %396 = vmatprep.subr.mxu0 0.0
    %397 = vmatpush2.msra.mxu0 0.0
    %398 = vmatprep.subr.mxu0 0.0
    %399 = vmatpush2.msra.mxu0 0.0
    %400 = vmatprep.mubr.f32.mxu0 0.0
    %401 = vmatmul.mubr.f32.gmra.mxu0 %v334
    %v402 = vpop.f32.mrf.mxu0
    %v403 = vadd.f32 0.0, %v402
    %v404 = vpop.f32.mrf.mxu0
    %405 = vdwg.mxu0
    %406 = vrot.lane.b32.xlu0 %v144, 64
    %v407 = vpop.permute.xlu0 %406
    %v410 = vsel %vm156, %v329, 0
    %412 = vmatprep.subr.mxu0 0.0
    %413 = vmatpush1.msra.mxu0 0.0
    %414 = vmatprep.subr.mxu0 0.0
    %415 = vmatpush1.msra.mxu0 0.0
    %416 = vmatprep.subr.mxu0 0.0
    %417 = vmatpush1.msra.mxu0 0.0
    %418 = vmatprep.subr.mxu0 0.0
    %419 = vmatpush1.msra.mxu0 0.0
    %420 = vmatprep.subr.mxu0 0.0
    %421 = vmatpush1.msra.mxu0 0.0
    %422 = vmatprep.subr.mxu0 0.0
    %423 = vmatpush1.msra.mxu0 0.0
    %424 = vmatprep.subr.mxu0 0.0
    %425 = vmatpush1.msra.mxu0 0.0
    %426 = vmatprep.subr.mxu0 0.0
    %427 = vmatpush1.msra.mxu0 0.0
    %428 = vmatprep.subr.mxu0 0.0
    %429 = vmatpush1.msra.mxu0 0.0
    %430 = vmatprep.subr.mxu0 0.0
    %431 = vmatpush1.msra.mxu0 0.0
    %432 = vmatprep.subr.mxu0 0.0
    %433 = vmatpush1.msra.mxu0 0.0
    %434 = vmatprep.subr.mxu0 0.0
    %435 = vmatpush1.msra.mxu0 0.0
    %436 = vmatprep.subr.mxu0 0.0
    %437 = vmatpush1.msra.mxu0 0.0
    %438 = vmatprep.subr.mxu0 0.0
    %439 = vmatpush1.msra.mxu0 0.0
    %440 = vmatprep.subr.mxu0 0.0
    %441 = vmatpush1.msra.mxu0 0.0
    %442 = vmatprep.subr.mxu0 0.0
    %443 = vmatpush1.msra.mxu0 %v407
    %444 = vmatprep.subr.mxu0 0.0
    %445 = vmatpush2.msra.mxu0 0.0
    %446 = vmatprep.subr.mxu0 0.0
    %447 = vmatpush2.msra.mxu0 0.0
    %448 = vmatprep.subr.mxu0 0.0
    %449 = vmatpush2.msra.mxu0 0.0
    %450 = vmatprep.subr.mxu0 0.0
    %451 = vmatpush2.msra.mxu0 0.0
    %452 = vmatprep.subr.mxu0 0.0
    %453 = vmatpush2.msra.mxu0 0.0
    %454 = vmatprep.subr.mxu0 0.0
    %455 = vmatpush2.msra.mxu0 0.0
    %456 = vmatprep.subr.mxu0 0.0
    %457 = vmatpush2.msra.mxu0 0.0
    %458 = vmatprep.subr.mxu0 0.0
    %459 = vmatpush2.msra.mxu0 0.0
    %460 = vmatprep.subr.mxu0 0.0
    %461 = vmatpush2.msra.mxu0 0.0
    %462 = vmatprep.subr.mxu0 0.0
    %463 = vmatpush2.msra.mxu0 0.0
    %464 = vmatprep.subr.mxu0 0.0
    %465 = vmatpush2.msra.mxu0 0.0
    %466 = vmatprep.subr.mxu0 0.0
    %467 = vmatpush2.msra.mxu0 0.0
    %468 = vmatprep.subr.mxu0 0.0
    %469 = vmatpush2.msra.mxu0 0.0
    %470 = vmatprep.subr.mxu0 0.0
    %471 = vmatpush2.msra.mxu0 0.0
    %472 = vmatprep.subr.mxu0 0.0
    %473 = vmatpush2.msra.mxu0 0.0
    %474 = vmatprep.subr.mxu0 0.0
    %475 = vmatpush2.msra.mxu0 0.0
    %476 = vmatprep.mubr.f32.mxu0 0.0
    %477 = vmatmul.mubr.f32.gmra.mxu0 %v410
    %v478 = vpop.f32.mrf.mxu0
    %v479 = vadd.f32 0.0, %v478
    %v480 = vpop.f32.mrf.mxu0
    %481 = vdwg.mxu0
    %v482 = vld [vmem:[#allocation7] sm:$0xff]
    %483 = vrot.lane.b32.xlu0 %v139, 120
    %v484 = vpop.permute.xlu0 %483
    %485 = vrot.lane.b32.xlu0 %v139, 88
    %v486 = vpop.permute.xlu0 %485
    %v487 = vsel %vm156, %v484, 0
    %v489 = vsel %vm156, %v486, 0
    %491 = vmatprep.subr.mxu0 0.0
    %492 = vmatpush1.xpose.msra.mxu0 0.0
    %493 = vmatprep.subr.mxu0 0.0
    %494 = vmatpush1.xpose.msra.mxu0 0.0
    %495 = vmatprep.subr.mxu0 0.0
    %496 = vmatpush1.xpose.msra.mxu0 0.0
    %497 = vmatprep.subr.mxu0 0.0
    %498 = vmatpush1.xpose.msra.mxu0 0.0
    %499 = vmatprep.subr.mxu0 0.0
    %500 = vmatpush1.xpose.msra.mxu0 0.0
    %501 = vmatprep.subr.mxu0 0.0
    %502 = vmatpush1.xpose.msra.mxu0 0.0
    %503 = vmatprep.subr.mxu0 0.0
    %504 = vmatpush1.xpose.msra.mxu0 0.0
    %505 = vmatprep.subr.mxu0 0.0
    %506 = vmatpush1.xpose.msra.mxu0 0.0
    %507 = vmatprep.subr.mxu0 0.0
    %508 = vmatpush1.xpose.msra.mxu0 0.0
    %509 = vmatprep.subr.mxu0 0.0
    %510 = vmatpush1.xpose.msra.mxu0 0.0
    %511 = vmatprep.subr.mxu0 0.0
    %512 = vmatpush1.xpose.msra.mxu0 0.0
    %513 = vmatprep.subr.mxu0 0.0
    %514 = vmatpush1.xpose.msra.mxu0 0.0
    %515 = vmatprep.subr.mxu0 0.0
    %516 = vmatpush1.xpose.msra.mxu0 0.0
    %517 = vmatprep.subr.mxu0 0.0
    %518 = vmatpush1.xpose.msra.mxu0 0.0
    %519 = vmatprep.subr.mxu0 0.0
    %520 = vmatpush1.xpose.msra.mxu0 0.0
    %521 = vmatprep.subr.mxu0 0.0
    %522 = vmatpush1.xpose.msra.mxu0 %v489
    %523 = vmatprep.subr.mxu0 0.0
    %524 = vmatpush2.xpose.msra.mxu0 0.0
    %525 = vmatprep.subr.mxu0 0.0
    %526 = vmatpush2.xpose.msra.mxu0 0.0
    %527 = vmatprep.subr.mxu0 0.0
    %528 = vmatpush2.xpose.msra.mxu0 0.0
    %529 = vmatprep.subr.mxu0 0.0
    %530 = vmatpush2.xpose.msra.mxu0 0.0
    %531 = vmatprep.subr.mxu0 0.0
    %532 = vmatpush2.xpose.msra.mxu0 0.0
    %533 = vmatprep.subr.mxu0 0.0
    %534 = vmatpush2.xpose.msra.mxu0 0.0
    %535 = vmatprep.subr.mxu0 0.0
    %536 = vmatpush2.xpose.msra.mxu0 0.0
    %537 = vmatprep.subr.mxu0 0.0
    %538 = vmatpush2.xpose.msra.mxu0 0.0
    %539 = vmatprep.subr.mxu0 0.0
    %540 = vmatpush2.xpose.msra.mxu0 0.0
    %541 = vmatprep.subr.mxu0 0.0
    %542 = vmatpush2.xpose.msra.mxu0 0.0
    %543 = vmatprep.subr.mxu0 0.0
    %544 = vmatpush2.xpose.msra.mxu0 0.0
    %545 = vmatprep.subr.mxu0 0.0
    %546 = vmatpush2.xpose.msra.mxu0 0.0
    %547 = vmatprep.subr.mxu0 0.0
    %548 = vmatpush2.xpose.msra.mxu0 0.0
    %549 = vmatprep.subr.mxu0 0.0
    %550 = vmatpush2.xpose.msra.mxu0 0.0
    %551 = vmatprep.subr.mxu0 0.0
    %552 = vmatpush2.xpose.msra.mxu0 0.0
    %553 = vmatprep.subr.mxu0 0.0
    %554 = vmatpush2.xpose.msra.mxu0 0.0
    %555 = vmatprep.mubr.f32.mxu0 0.0
    %556 = vmatmul.mubr.f32.gmra.mxu0 %v487
    %v557 = vpop.f32.mrf.mxu0
    %v558 = vadd.f32 %v152, %v557
    %v559 = vpop.f32.mrf.mxu0
    %560 = vdwg.mxu0
    %561 = vrot.lane.b32.xlu0 %v144, 120
    %v562 = vpop.permute.xlu0 %561
    %563 = vrot.lane.b32.xlu0 %v144, 88
    %v564 = vpop.permute.xlu0 %563
    %v565 = vsel %vm156, %v562, 0
    %v567 = vsel %vm156, %v564, 0
    %569 = vmatprep.subr.mxu0 0.0
    %570 = vmatpush1.xpose.msra.mxu0 0.0
    %571 = vmatprep.subr.mxu0 0.0
    %572 = vmatpush1.xpose.msra.mxu0 0.0
    %573 = vmatprep.subr.mxu0 0.0
    %574 = vmatpush1.xpose.msra.mxu0 0.0
    %575 = vmatprep.subr.mxu0 0.0
    %576 = vmatpush1.xpose.msra.mxu0 0.0
    %577 = vmatprep.subr.mxu0 0.0
    %578 = vmatpush1.xpose.msra.mxu0 0.0
    %579 = vmatprep.subr.mxu0 0.0
    %580 = vmatpush1.xpose.msra.mxu0 0.0
    %581 = vmatprep.subr.mxu0 0.0
    %582 = vmatpush1.xpose.msra.mxu0 0.0
    %583 = vmatprep.subr.mxu0 0.0
    %584 = vmatpush1.xpose.msra.mxu0 0.0
    %585 = vmatprep.subr.mxu0 0.0
    %586 = vmatpush1.xpose.msra.mxu0 0.0
    %587 = vmatprep.subr.mxu0 0.0
    %588 = vmatpush1.xpose.msra.mxu0 0.0
    %589 = vmatprep.subr.mxu0 0.0
    %590 = vmatpush1.xpose.msra.mxu0 0.0
    %591 = vmatprep.subr.mxu0 0.0
    %592 = vmatpush1.xpose.msra.mxu0 0.0
    %593 = vmatprep.subr.mxu0 0.0
    %594 = vmatpush1.xpose.msra.mxu0 0.0
    %595 = vmatprep.subr.mxu0 0.0
    %596 = vmatpush1.xpose.msra.mxu0 0.0
    %597 = vmatprep.subr.mxu0 0.0
    %598 = vmatpush1.xpose.msra.mxu0 0.0
    %599 = vmatprep.subr.mxu0 0.0
    %600 = vmatpush1.xpose.msra.mxu0 %v567
    %601 = vmatprep.subr.mxu0 0.0
    %602 = vmatpush2.xpose.msra.mxu0 0.0
    %603 = vmatprep.subr.mxu0 0.0
    %604 = vmatpush2.xpose.msra.mxu0 0.0
    %605 = vmatprep.subr.mxu0 0.0
    %606 = vmatpush2.xpose.msra.mxu0 0.0
    %607 = vmatprep.subr.mxu0 0.0
    %608 = vmatpush2.xpose.msra.mxu0 0.0
    %609 = vmatprep.subr.mxu0 0.0
    %610 = vmatpush2.xpose.msra.mxu0 0.0
    %611 = vmatprep.subr.mxu0 0.0
    %612 = vmatpush2.xpose.msra.mxu0 0.0
    %613 = vmatprep.subr.mxu0 0.0
    %614 = vmatpush2.xpose.msra.mxu0 0.0
    %615 = vmatprep.subr.mxu0 0.0
    %616 = vmatpush2.xpose.msra.mxu0 0.0
    %617 = vmatprep.subr.mxu0 0.0
    %618 = vmatpush2.xpose.msra.mxu0 0.0
    %619 = vmatprep.subr.mxu0 0.0
    %620 = vmatpush2.xpose.msra.mxu0 0.0
    %621 = vmatprep.subr.mxu0 0.0
    %622 = vmatpush2.xpose.msra.mxu0 0.0
    %623 = vmatprep.subr.mxu0 0.0
    %624 = vmatpush2.xpose.msra.mxu0 0.0
    %625 = vmatprep.subr.mxu0 0.0
    %626 = vmatpush2.xpose.msra.mxu0 0.0
    %627 = vmatprep.subr.mxu0 0.0
    %628 = vmatpush2.xpose.msra.mxu0 0.0
    %629 = vmatprep.subr.mxu0 0.0
    %630 = vmatpush2.xpose.msra.mxu0 0.0
    %631 = vmatprep.subr.mxu0 0.0
    %632 = vmatpush2.xpose.msra.mxu0 0.0
    %633 = vmatprep.mubr.f32.mxu0 0.0
    %634 = vmatmul.mubr.f32.gmra.mxu0 %v565
    %v635 = vpop.f32.mrf.mxu0
    %v636 = vadd.f32 %v152, %v635
    %v637 = vpop.f32.mrf.mxu0
    %638 = vdwg.mxu0
    %v639 = vsel %vm156, %v558, -inf
    %640 = vmax.xlane.f32.xlu0 %v639
    %v641 = vpop.xlane.xlu0 %640
    %v642 = vsel %vm156, %v636, -inf
    %643 = vmax.xlane.f32.xlu0 %v642
    %v644 = vpop.xlane.xlu0 %643
    %v645 = vsub.f32 %v558, %v641
    %v646 = vsub.f32 %v636, %v644
    %v647 = vmul.f32 %v645, 1.442695
    %v648 = vpow.pop %v647
    %v649 = vmul.f32 %v646, 1.442695
    %v650 = vpow.pop %v649
    %v651 = vsel %vm156, %v648, 0.0
    %652 = vadd.xlane.f32.xlu0 %v651
    %v653 = vpop.xlane.xlu0 %652
    %v654 = vsel %vm156, %v650, 0.0
    %655 = vadd.xlane.f32.xlu0 %v654
    %v656 = vpop.xlane.xlu0 %655
    %v657 = vrcp.pop %v653
    %v658 = vrcp.pop %v656
    %v659 = vmul.f32 %v648, %v657
    %v660 = vmul.f32 %v650, %v658
    %661 = vrot.lane.b32.xlu0 %v139, 56
    %v662 = vpop.permute.xlu0 %661
    %v665 = vsel %vm156, %v659, 0
    %667 = vmatprep.subr.mxu0 0.0
    %668 = vmatpush1.msra.mxu0 0.0
    %669 = vmatprep.subr.mxu0 0.0
    %670 = vmatpush1.msra.mxu0 0.0
    %671 = vmatprep.subr.mxu0 0.0
    %672 = vmatpush1.msra.mxu0 0.0
    %673 = vmatprep.subr.mxu0 0.0
    %674 = vmatpush1.msra.mxu0 0.0
    %675 = vmatprep.subr.mxu0 0.0
    %676 = vmatpush1.msra.mxu0 0.0
    %677 = vmatprep.subr.mxu0 0.0
    %678 = vmatpush1.msra.mxu0 0.0
    %679 = vmatprep.subr.mxu0 0.0
    %680 = vmatpush1.msra.mxu0 0.0
    %681 = vmatprep.subr.mxu0 0.0
    %682 = vmatpush1.msra.mxu0 0.0
    %683 = vmatprep.subr.mxu0 0.0
    %684 = vmatpush1.msra.mxu0 0.0
    %685 = vmatprep.subr.mxu0 0.0
    %686 = vmatpush1.msra.mxu0 0.0
    %687 = vmatprep.subr.mxu0 0.0
    %688 = vmatpush1.msra.mxu0 0.0
    %689 = vmatprep.subr.mxu0 0.0
    %690 = vmatpush1.msra.mxu0 0.0
    %691 = vmatprep.subr.mxu0 0.0
    %692 = vmatpush1.msra.mxu0 0.0
    %693 = vmatprep.subr.mxu0 0.0
    %694 = vmatpush1.msra.mxu0 0.0
    %695 = vmatprep.subr.mxu0 0.0
    %696 = vmatpush1.msra.mxu0 0.0
    %697 = vmatprep.subr.mxu0 0.0
    %698 = vmatpush1.msra.mxu0 %v662
    %699 = vmatprep.subr.mxu0 0.0
    %700 = vmatpush2.msra.mxu0 0.0
    %701 = vmatprep.subr.mxu0 0.0
    %702 = vmatpush2.msra.mxu0 0.0
    %703 = vmatprep.subr.mxu0 0.0
    %704 = vmatpush2.msra.mxu0 0.0
    %705 = vmatprep.subr.mxu0 0.0
    %706 = vmatpush2.msra.mxu0 0.0
    %707 = vmatprep.subr.mxu0 0.0
    %708 = vmatpush2.msra.mxu0 0.0
    %709 = vmatprep.subr.mxu0 0.0
    %710 = vmatpush2.msra.mxu0 0.0
    %711 = vmatprep.subr.mxu0 0.0
    %712 = vmatpush2.msra.mxu0 0.0
    %713 = vmatprep.subr.mxu0 0.0
    %714 = vmatpush2.msra.mxu0 0.0
    %715 = vmatprep.subr.mxu0 0.0
    %716 = vmatpush2.msra.mxu0 0.0
    %717 = vmatprep.subr.mxu0 0.0
    %718 = vmatpush2.msra.mxu0 0.0
    %719 = vmatprep.subr.mxu0 0.0
    %720 = vmatpush2.msra.mxu0 0.0
    %721 = vmatprep.subr.mxu0 0.0
    %722 = vmatpush2.msra.mxu0 0.0
    %723 = vmatprep.subr.mxu0 0.0
    %724 = vmatpush2.msra.mxu0 0.0
    %725 = vmatprep.subr.mxu0 0.0
    %726 = vmatpush2.msra.mxu0 0.0
    %727 = vmatprep.subr.mxu0 0.0
    %728 = vmatpush2.msra.mxu0 0.0
    %729 = vmatprep.subr.mxu0 0.0
    %730 = vmatpush2.msra.mxu0 0.0
    %731 = vmatprep.mubr.f32.mxu0 0.0
    %732 = vmatmul.mubr.f32.gmra.mxu0 %v665
    %v733 = vpop.f32.mrf.mxu0
    %v734 = vadd.f32 0.0, %v733
    %v735 = vpop.f32.mrf.mxu0
    %736 = vdwg.mxu0
    %737 = vrot.lane.b32.xlu0 %v144, 56
    %v738 = vpop.permute.xlu0 %737
    %v741 = vsel %vm156, %v660, 0
    %743 = vmatprep.subr.mxu0 0.0
    %744 = vmatpush1.msra.mxu0 0.0
    %745 = vmatprep.subr.mxu0 0.0
    %746 = vmatpush1.msra.mxu0 0.0
    %747 = vmatprep.subr.mxu0 0.0
    %748 = vmatpush1.msra.mxu0 0.0
    %749 = vmatprep.subr.mxu0 0.0
    %750 = vmatpush1.msra.mxu0 0.0
    %751 = vmatprep.subr.mxu0 0.0
    %752 = vmatpush1.msra.mxu0 0.0
    %753 = vmatprep.subr.mxu0 0.0
    %754 = vmatpush1.msra.mxu0 0.0
    %755 = vmatprep.subr.mxu0 0.0
    %756 = vmatpush1.msra.mxu0 0.0
    %757 = vmatprep.subr.mxu0 0.0
    %758 = vmatpush1.msra.mxu0 0.0
    %759 = vmatprep.subr.mxu0 0.0
    %760 = vmatpush1.msra.mxu0 0.0
    %761 = vmatprep.subr.mxu0 0.0
    %762 = vmatpush1.msra.mxu0 0.0
    %763 = vmatprep.subr.mxu0 0.0
    %764 = vmatpush1.msra.mxu0 0.0
    %765 = vmatprep.subr.mxu0 0.0
    %766 = vmatpush1.msra.mxu0 0.0
    %767 = vmatprep.subr.mxu0 0.0
    %768 = vmatpush1.msra.mxu0 0.0
    %769 = vmatprep.subr.mxu0 0.0
    %770 = vmatpush1.msra.mxu0 0.0
    %771 = vmatprep.subr.mxu0 0.0
    %772 = vmatpush1.msra.mxu0 0.0
    %773 = vmatprep.subr.mxu0 0.0
    %774 = vmatpush1.msra.mxu0 %v738
    %775 = vmatprep.subr.mxu0 0.0
    %776 = vmatpush2.msra.mxu0 0.0
    %777 = vmatprep.subr.mxu0 0.0
    %778 = vmatpush2.msra.mxu0 0.0
    %779 = vmatprep.subr.mxu0 0.0
    %780 = vmatpush2.msra.mxu0 0.0
    %781 = vmatprep.subr.mxu0 0.0
    %782 = vmatpush2.msra.mxu0 0.0
    %783 = vmatprep.subr.mxu0 0.0
    %784 = vmatpush2.msra.mxu0 0.0
    %785 = vmatprep.subr.mxu0 0.0
    %786 = vmatpush2.msra.mxu0 0.0
    %787 = vmatprep.subr.mxu0 0.0
    %788 = vmatpush2.msra.mxu0 0.0
    %789 = vmatprep.subr.mxu0 0.0
    %790 = vmatpush2.msra.mxu0 0.0
    %791 = vmatprep.subr.mxu0 0.0
    %792 = vmatpush2.msra.mxu0 0.0
    %793 = vmatprep.subr.mxu0 0.0
    %794 = vmatpush2.msra.mxu0 0.0
    %795 = vmatprep.subr.mxu0 0.0
    %796 = vmatpush2.msra.mxu0 0.0
    %797 = vmatprep.subr.mxu0 0.0
    %798 = vmatpush2.msra.mxu0 0.0
    %799 = vmatprep.subr.mxu0 0.0
    %800 = vmatpush2.msra.mxu0 0.0
    %801 = vmatprep.subr.mxu0 0.0
    %802 = vmatpush2.msra.mxu0 0.0
    %803 = vmatprep.subr.mxu0 0.0
    %804 = vmatpush2.msra.mxu0 0.0
    %805 = vmatprep.subr.mxu0 0.0
    %806 = vmatpush2.msra.mxu0 0.0
    %807 = vmatprep.mubr.f32.mxu0 0.0
    %808 = vmatmul.mubr.f32.gmra.mxu0 %v741
    %v809 = vpop.f32.mrf.mxu0
    %v810 = vadd.f32 0.0, %v809
    %v811 = vpop.f32.mrf.mxu0
    %812 = vdwg.mxu0
    %s813 = scalar_lea.vmem [#allocation7], 8
    %v814 = vld [vmem:[%s813] sm:$0xff]
    %v816 = vsel %vm156, %v734, 0
    %v819 = vsel %vm156, %v810, 0
    %821 = vmatprep.subr.mxu0 0.0
    %822 = vmatpush1.msra.mxu0 0.0
    %823 = vmatprep.subr.mxu0 0.0
    %824 = vmatpush1.msra.mxu0 0.0
    %825 = vmatprep.subr.mxu0 0.0
    %826 = vmatpush1.msra.mxu0 0.0
    %827 = vmatprep.subr.mxu0 0.0
    %828 = vmatpush1.msra.mxu0 0.0
    %829 = vmatprep.subr.mxu0 0.0
    %830 = vmatpush1.msra.mxu0 0.0
    %831 = vmatprep.subr.mxu0 0.0
    %832 = vmatpush1.msra.mxu0 0.0
    %833 = vmatprep.subr.mxu0 0.0
    %834 = vmatpush1.msra.mxu0 0.0
    %835 = vmatprep.subr.mxu0 0.0
    %836 = vmatpush1.msra.mxu0 0.0
    %837 = vmatprep.subr.mxu0 0.0
    %838 = vmatpush1.msra.mxu0 0.0
    %839 = vmatprep.subr.mxu0 0.0
    %840 = vmatpush1.msra.mxu0 0.0
    %841 = vmatprep.subr.mxu0 0.0
    %842 = vmatpush1.msra.mxu0 0.0
    %843 = vmatprep.subr.mxu0 0.0
    %844 = vmatpush1.msra.mxu0 0.0
    %845 = vmatprep.subr.mxu0 0.0
    %846 = vmatpush1.msra.mxu0 0.0
    %847 = vmatprep.subr.mxu0 0.0
    %848 = vmatpush1.msra.mxu0 0.0
    %849 = vmatprep.subr.mxu0 0.0
    %850 = vmatpush1.msra.mxu0 0.0
    %851 = vmatprep.subr.mxu0 0.0
    %852 = vmatpush1.msra.mxu0 %v814
    %853 = vmatprep.subr.mxu0 0.0
    %854 = vmatpush2.msra.mxu0 0.0
    %855 = vmatprep.subr.mxu0 0.0
    %856 = vmatpush2.msra.mxu0 0.0
    %857 = vmatprep.subr.mxu0 0.0
    %858 = vmatpush2.msra.mxu0 0.0
    %859 = vmatprep.subr.mxu0 0.0
    %860 = vmatpush2.msra.mxu0 0.0
    %861 = vmatprep.subr.mxu0 0.0
    %862 = vmatpush2.msra.mxu0 0.0
    %863 = vmatprep.subr.mxu0 0.0
    %864 = vmatpush2.msra.mxu0 0.0
    %865 = vmatprep.subr.mxu0 0.0
    %866 = vmatpush2.msra.mxu0 0.0
    %867 = vmatprep.subr.mxu0 0.0
    %868 = vmatpush2.msra.mxu0 0.0
    %869 = vmatprep.subr.mxu0 0.0
    %870 = vmatpush2.msra.mxu0 0.0
    %871 = vmatprep.subr.mxu0 0.0
    %872 = vmatpush2.msra.mxu0 0.0
    %873 = vmatprep.subr.mxu0 0.0
    %874 = vmatpush2.msra.mxu0 0.0
    %875 = vmatprep.subr.mxu0 0.0
    %876 = vmatpush2.msra.mxu0 0.0
    %877 = vmatprep.subr.mxu0 0.0
    %878 = vmatpush2.msra.mxu0 0.0
    %879 = vmatprep.subr.mxu0 0.0
    %880 = vmatpush2.msra.mxu0 0.0
    %881 = vmatprep.subr.mxu0 0.0
    %882 = vmatpush2.msra.mxu0 0.0
    %883 = vmatprep.subr.mxu0 0.0
    %884 = vmatpush2.msra.mxu0 0.0
    %885 = vmatprep.mubr.f32.mxu0 0.0
    %886 = vmatmul.mubr.f32.gmra.mxu0 %v816
    %v887 = vpop.f32.mrf.mxu0
    %v888 = vadd.f32 0.0, %v887
    %v889 = vpop.f32.mrf.mxu0
    %890 = vmatprep.mubr.f32.mxu0 0.0
    %891 = vmatmul.mubr.f32.gmra.mxu0 %v819
    %v892 = vpop.f32.mrf.mxu0
    %v893 = vadd.f32 0.0, %v892
    %v894 = vpop.f32.mrf.mxu0
    %895 = vdwg.mxu0
    %v897 = vsel %vm156, %v403, 0
    %v900 = vsel %vm156, %v479, 0
    %902 = vmatprep.subr.mxu0 0.0
    %903 = vmatpush1.msra.mxu0 0.0
    %904 = vmatprep.subr.mxu0 0.0
    %905 = vmatpush1.msra.mxu0 0.0
    %906 = vmatprep.subr.mxu0 0.0
    %907 = vmatpush1.msra.mxu0 0.0
    %908 = vmatprep.subr.mxu0 0.0
    %909 = vmatpush1.msra.mxu0 0.0
    %910 = vmatprep.subr.mxu0 0.0
    %911 = vmatpush1.msra.mxu0 0.0
    %912 = vmatprep.subr.mxu0 0.0
    %913 = vmatpush1.msra.mxu0 0.0
    %914 = vmatprep.subr.mxu0 0.0
    %915 = vmatpush1.msra.mxu0 0.0
    %916 = vmatprep.subr.mxu0 0.0
    %917 = vmatpush1.msra.mxu0 0.0
    %918 = vmatprep.subr.mxu0 0.0
    %919 = vmatpush1.msra.mxu0 0.0
    %920 = vmatprep.subr.mxu0 0.0
    %921 = vmatpush1.msra.mxu0 0.0
    %922 = vmatprep.subr.mxu0 0.0
    %923 = vmatpush1.msra.mxu0 0.0
    %924 = vmatprep.subr.mxu0 0.0
    %925 = vmatpush1.msra.mxu0 0.0
    %926 = vmatprep.subr.mxu0 0.0
    %927 = vmatpush1.msra.mxu0 0.0
    %928 = vmatprep.subr.mxu0 0.0
    %929 = vmatpush1.msra.mxu0 0.0
    %930 = vmatprep.subr.mxu0 0.0
    %931 = vmatpush1.msra.mxu0 0.0
    %932 = vmatprep.subr.mxu0 0.0
    %933 = vmatpush1.msra.mxu0 %v482
    %934 = vmatprep.subr.mxu0 0.0
    %935 = vmatpush2.msra.mxu0 0.0
    %936 = vmatprep.subr.mxu0 0.0
    %937 = vmatpush2.msra.mxu0 0.0
    %938 = vmatprep.subr.mxu0 0.0
    %939 = vmatpush2.msra.mxu0 0.0
    %940 = vmatprep.subr.mxu0 0.0
    %941 = vmatpush2.msra.mxu0 0.0
    %942 = vmatprep.subr.mxu0 0.0
    %943 = vmatpush2.msra.mxu0 0.0
    %944 = vmatprep.subr.mxu0 0.0
    %945 = vmatpush2.msra.mxu0 0.0
    %946 = vmatprep.subr.mxu0 0.0
    %947 = vmatpush2.msra.mxu0 0.0
    %948 = vmatprep.subr.mxu0 0.0
    %949 = vmatpush2.msra.mxu0 0.0
    %950 = vmatprep.subr.mxu0 0.0
    %951 = vmatpush2.msra.mxu0 0.0
    %952 = vmatprep.subr.mxu0 0.0
    %953 = vmatpush2.msra.mxu0 0.0
    %954 = vmatprep.subr.mxu0 0.0
    %955 = vmatpush2.msra.mxu0 0.0
    %956 = vmatprep.subr.mxu0 0.0
    %957 = vmatpush2.msra.mxu0 0.0
    %958 = vmatprep.subr.mxu0 0.0
    %959 = vmatpush2.msra.mxu0 0.0
    %960 = vmatprep.subr.mxu0 0.0
    %961 = vmatpush2.msra.mxu0 0.0
    %962 = vmatprep.subr.mxu0 0.0
    %963 = vmatpush2.msra.mxu0 0.0
    %964 = vmatprep.subr.mxu0 0.0
    %965 = vmatpush2.msra.mxu0 0.0
    %966 = vmatprep.mubr.f32.mxu0 0.0
    %967 = vmatmul.mubr.f32.gmra.mxu0 %v897
    %v968 = vpop.f32.mrf.mxu0
    %v969 = vadd.f32 %v888, %v968
    %v970 = vpop.f32.mrf.mxu0
    %971 = vmatprep.mubr.f32.mxu0 0.0
    %972 = vmatmul.mubr.f32.gmra.mxu0 %v900
    %v973 = vpop.f32.mrf.mxu0
    %v974 = vadd.f32 %v893, %v973
    %v975 = vpop.f32.mrf.mxu0
    %976 = vdwg.mxu0
    %977 = vrot.lane.b32.xlu0 %v139, 112
    %v978 = vpop.permute.xlu0 %977
    %979 = vrot.lane.b32.xlu0 %v139, 80
    %v980 = vpop.permute.xlu0 %979
    %v981 = vsel %vm156, %v978, 0
    %v983 = vsel %vm156, %v980, 0
    %985 = vmatprep.subr.mxu0 0.0
    %986 = vmatpush1.xpose.msra.mxu0 0.0
    %987 = vmatprep.subr.mxu0 0.0
    %988 = vmatpush1.xpose.msra.mxu0 0.0
    %989 = vmatprep.subr.mxu0 0.0
    %990 = vmatpush1.xpose.msra.mxu0 0.0
    %991 = vmatprep.subr.mxu0 0.0
    %992 = vmatpush1.xpose.msra.mxu0 0.0
    %993 = vmatprep.subr.mxu0 0.0
    %994 = vmatpush1.xpose.msra.mxu0 0.0
    %995 = vmatprep.subr.mxu0 0.0
    %996 = vmatpush1.xpose.msra.mxu0 0.0
    %997 = vmatprep.subr.mxu0 0.0
    %998 = vmatpush1.xpose.msra.mxu0 0.0
    %999 = vmatprep.subr.mxu0 0.0
    %1000 = vmatpush1.xpose.msra.mxu0 0.0
    %1001 = vmatprep.subr.mxu0 0.0
    %1002 = vmatpush1.xpose.msra.mxu0 0.0
    %1003 = vmatprep.subr.mxu0 0.0
    %1004 = vmatpush1.xpose.msra.mxu0 0.0
    %1005 = vmatprep.subr.mxu0 0.0
    %1006 = vmatpush1.xpose.msra.mxu0 0.0
    %1007 = vmatprep.subr.mxu0 0.0
    %1008 = vmatpush1.xpose.msra.mxu0 0.0
    %1009 = vmatprep.subr.mxu0 0.0
    %1010 = vmatpush1.xpose.msra.mxu0 0.0
    %1011 = vmatprep.subr.mxu0 0.0
    %1012 = vmatpush1.xpose.msra.mxu0 0.0
    %1013 = vmatprep.subr.mxu0 0.0
    %1014 = vmatpush1.xpose.msra.mxu0 0.0
    %1015 = vmatprep.subr.mxu0 0.0
    %1016 = vmatpush1.xpose.msra.mxu0 %v983
    %1017 = vmatprep.subr.mxu0 0.0
    %1018 = vmatpush2.xpose.msra.mxu0 0.0
    %1019 = vmatprep.subr.mxu0 0.0
    %1020 = vmatpush2.xpose.msra.mxu0 0.0
    %1021 = vmatprep.subr.mxu0 0.0
    %1022 = vmatpush2.xpose.msra.mxu0 0.0
    %1023 = vmatprep.subr.mxu0 0.0
    %1024 = vmatpush2.xpose.msra.mxu0 0.0
    %1025 = vmatprep.subr.mxu0 0.0
    %1026 = vmatpush2.xpose.msra.mxu0 0.0
    %1027 = vmatprep.subr.mxu0 0.0
    %1028 = vmatpush2.xpose.msra.mxu0 0.0
    %1029 = vmatprep.subr.mxu0 0.0
    %1030 = vmatpush2.xpose.msra.mxu0 0.0
    %1031 = vmatprep.subr.mxu0 0.0
    %1032 = vmatpush2.xpose.msra.mxu0 0.0
    %1033 = vmatprep.subr.mxu0 0.0
    %1034 = vmatpush2.xpose.msra.mxu0 0.0
    %1035 = vmatprep.subr.mxu0 0.0
    %1036 = vmatpush2.xpose.msra.mxu0 0.0
    %1037 = vmatprep.subr.mxu0 0.0
    %1038 = vmatpush2.xpose.msra.mxu0 0.0
    %1039 = vmatprep.subr.mxu0 0.0
    %1040 = vmatpush2.xpose.msra.mxu0 0.0
    %1041 = vmatprep.subr.mxu0 0.0
    %1042 = vmatpush2.xpose.msra.mxu0 0.0
    %1043 = vmatprep.subr.mxu0 0.0
    %1044 = vmatpush2.xpose.msra.mxu0 0.0
    %1045 = vmatprep.subr.mxu0 0.0
    %1046 = vmatpush2.xpose.msra.mxu0 0.0
    %1047 = vmatprep.subr.mxu0 0.0
    %1048 = vmatpush2.xpose.msra.mxu0 0.0
    %1049 = vmatprep.mubr.f32.mxu0 0.0
    %1050 = vmatmul.mubr.f32.gmra.mxu0 %v981
    %v1051 = vpop.f32.mrf.mxu0
    %v1052 = vadd.f32 %v152, %v1051
    %v1053 = vpop.f32.mrf.mxu0
    %1054 = vdwg.mxu0
    %1055 = vrot.lane.b32.xlu0 %v144, 112
    %v1056 = vpop.permute.xlu0 %1055
    %1057 = vrot.lane.b32.xlu0 %v144, 80
    %v1058 = vpop.permute.xlu0 %1057
    %v1059 = vsel %vm156, %v1056, 0
    %v1061 = vsel %vm156, %v1058, 0
    %1063 = vmatprep.subr.mxu0 0.0
    %1064 = vmatpush1.xpose.msra.mxu0 0.0
    %1065 = vmatprep.subr.mxu0 0.0
    %1066 = vmatpush1.xpose.msra.mxu0 0.0
    %1067 = vmatprep.subr.mxu0 0.0
    %1068 = vmatpush1.xpose.msra.mxu0 0.0
    %1069 = vmatprep.subr.mxu0 0.0
    %1070 = vmatpush1.xpose.msra.mxu0 0.0
    %1071 = vmatprep.subr.mxu0 0.0
    %1072 = vmatpush1.xpose.msra.mxu0 0.0
    %1073 = vmatprep.subr.mxu0 0.0
    %1074 = vmatpush1.xpose.msra.mxu0 0.0
    %1075 = vmatprep.subr.mxu0 0.0
    %1076 = vmatpush1.xpose.msra.mxu0 0.0
    %1077 = vmatprep.subr.mxu0 0.0
    %1078 = vmatpush1.xpose.msra.mxu0 0.0
    %1079 = vmatprep.subr.mxu0 0.0
    %1080 = vmatpush1.xpose.msra.mxu0 0.0
    %1081 = vmatprep.subr.mxu0 0.0
    %1082 = vmatpush1.xpose.msra.mxu0 0.0
    %1083 = vmatprep.subr.mxu0 0.0
    %1084 = vmatpush1.xpose.msra.mxu0 0.0
    %1085 = vmatprep.subr.mxu0 0.0
    %1086 = vmatpush1.xpose.msra.mxu0 0.0
    %1087 = vmatprep.subr.mxu0 0.0
    %1088 = vmatpush1.xpose.msra.mxu0 0.0
    %1089 = vmatprep.subr.mxu0 0.0
    %1090 = vmatpush1.xpose.msra.mxu0 0.0
    %1091 = vmatprep.subr.mxu0 0.0
    %1092 = vmatpush1.xpose.msra.mxu0 0.0
    %1093 = vmatprep.subr.mxu0 0.0
    %1094 = vmatpush1.xpose.msra.mxu0 %v1061
    %1095 = vmatprep.subr.mxu0 0.0
    %1096 = vmatpush2.xpose.msra.mxu0 0.0
    %1097 = vmatprep.subr.mxu0 0.0
    %1098 = vmatpush2.xpose.msra.mxu0 0.0
    %1099 = vmatprep.subr.mxu0 0.0
    %1100 = vmatpush2.xpose.msra.mxu0 0.0
    %1101 = vmatprep.subr.mxu0 0.0
    %1102 = vmatpush2.xpose.msra.mxu0 0.0
    %1103 = vmatprep.subr.mxu0 0.0
    %1104 = vmatpush2.xpose.msra.mxu0 0.0
    %1105 = vmatprep.subr.mxu0 0.0
    %1106 = vmatpush2.xpose.msra.mxu0 0.0
    %1107 = vmatprep.subr.mxu0 0.0
    %1108 = vmatpush2.xpose.msra.mxu0 0.0
    %1109 = vmatprep.subr.mxu0 0.0
    %1110 = vmatpush2.xpose.msra.mxu0 0.0
    %1111 = vmatprep.subr.mxu0 0.0
    %1112 = vmatpush2.xpose.msra.mxu0 0.0
    %1113 = vmatprep.subr.mxu0 0.0
    %1114 = vmatpush2.xpose.msra.mxu0 0.0
    %1115 = vmatprep.subr.mxu0 0.0
    %1116 = vmatpush2.xpose.msra.mxu0 0.0
    %1117 = vmatprep.subr.mxu0 0.0
    %1118 = vmatpush2.xpose.msra.mxu0 0.0
    %1119 = vmatprep.subr.mxu0 0.0
    %1120 = vmatpush2.xpose.msra.mxu0 0.0
    %1121 = vmatprep.subr.mxu0 0.0
    %1122 = vmatpush2.xpose.msra.mxu0 0.0
    %1123 = vmatprep.subr.mxu0 0.0
    %1124 = vmatpush2.xpose.msra.mxu0 0.0
    %1125 = vmatprep.subr.mxu0 0.0
    %1126 = vmatpush2.xpose.msra.mxu0 0.0
    %1127 = vmatprep.mubr.f32.mxu0 0.0
    %1128 = vmatmul.mubr.f32.gmra.mxu0 %v1059
    %v1129 = vpop.f32.mrf.mxu0
    %v1130 = vadd.f32 %v152, %v1129
    %v1131 = vpop.f32.mrf.mxu0
    %1132 = vdwg.mxu0
    %v1133 = vsel %vm156, %v1052, -inf
    %1134 = vmax.xlane.f32.xlu0 %v1133
    %v1135 = vpop.xlane.xlu0 %1134
    %v1136 = vsel %vm156, %v1130, -inf
    %1137 = vmax.xlane.f32.xlu0 %v1136
    %v1138 = vpop.xlane.xlu0 %1137
    %v1139 = vsub.f32 %v1052, %v1135
    %v1140 = vsub.f32 %v1130, %v1138
    %v1141 = vmul.f32 %v1139, 1.442695
    %v1142 = vpow.pop %v1141
    %v1143 = vmul.f32 %v1140, 1.442695
    %v1144 = vpow.pop %v1143
    %v1145 = vsel %vm156, %v1142, 0.0
    %1146 = vadd.xlane.f32.xlu0 %v1145
    %v1147 = vpop.xlane.xlu0 %1146
    %v1148 = vsel %vm156, %v1144, 0.0
    %1149 = vadd.xlane.f32.xlu0 %v1148
    %v1150 = vpop.xlane.xlu0 %1149
    %v1151 = vrcp.pop %v1147
    %v1152 = vrcp.pop %v1150
    %v1153 = vmul.f32 %v1142, %v1151
    %v1154 = vmul.f32 %v1144, %v1152
    %1155 = vrot.lane.b32.xlu0 %v139, 48
    %v1156 = vpop.permute.xlu0 %1155
    %v1159 = vsel %vm156, %v1153, 0
    %1161 = vmatprep.subr.mxu0 0.0
    %1162 = vmatpush1.msra.mxu0 0.0
    %1163 = vmatprep.subr.mxu0 0.0
    %1164 = vmatpush1.msra.mxu0 0.0
    %1165 = vmatprep.subr.mxu0 0.0
    %1166 = vmatpush1.msra.mxu0 0.0
    %1167 = vmatprep.subr.mxu0 0.0
    %1168 = vmatpush1.msra.mxu0 0.0
    %1169 = vmatprep.subr.mxu0 0.0
    %1170 = vmatpush1.msra.mxu0 0.0
    %1171 = vmatprep.subr.mxu0 0.0
    %1172 = vmatpush1.msra.mxu0 0.0
    %1173 = vmatprep.subr.mxu0 0.0
    %1174 = vmatpush1.msra.mxu0 0.0
    %1175 = vmatprep.subr.mxu0 0.0
    %1176 = vmatpush1.msra.mxu0 0.0
    %1177 = vmatprep.subr.mxu0 0.0
    %1178 = vmatpush1.msra.mxu0 0.0
    %1179 = vmatprep.subr.mxu0 0.0
    %1180 = vmatpush1.msra.mxu0 0.0
    %1181 = vmatprep.subr.mxu0 0.0
    %1182 = vmatpush1.msra.mxu0 0.0
    %1183 = vmatprep.subr.mxu0 0.0
    %1184 = vmatpush1.msra.mxu0 0.0
    %1185 = vmatprep.subr.mxu0 0.0
    %1186 = vmatpush1.msra.mxu0 0.0
    %1187 = vmatprep.subr.mxu0 0.0
    %1188 = vmatpush1.msra.mxu0 0.0
    %1189 = vmatprep.subr.mxu0 0.0
    %1190 = vmatpush1.msra.mxu0 0.0
    %1191 = vmatprep.subr.mxu0 0.0
    %1192 = vmatpush1.msra.mxu0 %v1156
    %1193 = vmatprep.subr.mxu0 0.0
    %1194 = vmatpush2.msra.mxu0 0.0
    %1195 = vmatprep.subr.mxu0 0.0
    %1196 = vmatpush2.msra.mxu0 0.0
    %1197 = vmatprep.subr.mxu0 0.0
    %1198 = vmatpush2.msra.mxu0 0.0
    %1199 = vmatprep.subr.mxu0 0.0
    %1200 = vmatpush2.msra.mxu0 0.0
    %1201 = vmatprep.subr.mxu0 0.0
    %1202 = vmatpush2.msra.mxu0 0.0
    %1203 = vmatprep.subr.mxu0 0.0
    %1204 = vmatpush2.msra.mxu0 0.0
    %1205 = vmatprep.subr.mxu0 0.0
    %1206 = vmatpush2.msra.mxu0 0.0
    %1207 = vmatprep.subr.mxu0 0.0
    %1208 = vmatpush2.msra.mxu0 0.0
    %1209 = vmatprep.subr.mxu0 0.0
    %1210 = vmatpush2.msra.mxu0 0.0
    %1211 = vmatprep.subr.mxu0 0.0
    %1212 = vmatpush2.msra.mxu0 0.0
    %1213 = vmatprep.subr.mxu0 0.0
    %1214 = vmatpush2.msra.mxu0 0.0
    %1215 = vmatprep.subr.mxu0 0.0
    %1216 = vmatpush2.msra.mxu0 0.0
    %1217 = vmatprep.subr.mxu0 0.0
    %1218 = vmatpush2.msra.mxu0 0.0
    %1219 = vmatprep.subr.mxu0 0.0
    %1220 = vmatpush2.msra.mxu0 0.0
    %1221 = vmatprep.subr.mxu0 0.0
    %1222 = vmatpush2.msra.mxu0 0.0
    %1223 = vmatprep.subr.mxu0 0.0
    %1224 = vmatpush2.msra.mxu0 0.0
    %1225 = vmatprep.mubr.f32.mxu0 0.0
    %1226 = vmatmul.mubr.f32.gmra.mxu0 %v1159
    %v1227 = vpop.f32.mrf.mxu0
    %v1228 = vadd.f32 0.0, %v1227
    %v1229 = vpop.f32.mrf.mxu0
    %1230 = vdwg.mxu0
    %1231 = vrot.lane.b32.xlu0 %v144, 48
    %v1232 = vpop.permute.xlu0 %1231
    %v1235 = vsel %vm156, %v1154, 0
    %1237 = vmatprep.subr.mxu0 0.0
    %1238 = vmatpush1.msra.mxu0 0.0
    %1239 = vmatprep.subr.mxu0 0.0
    %1240 = vmatpush1.msra.mxu0 0.0
    %1241 = vmatprep.subr.mxu0 0.0
    %1242 = vmatpush1.msra.mxu0 0.0
    %1243 = vmatprep.subr.mxu0 0.0
    %1244 = vmatpush1.msra.mxu0 0.0
    %1245 = vmatprep.subr.mxu0 0.0
    %1246 = vmatpush1.msra.mxu0 0.0
    %1247 = vmatprep.subr.mxu0 0.0
    %1248 = vmatpush1.msra.mxu0 0.0
    %1249 = vmatprep.subr.mxu0 0.0
    %1250 = vmatpush1.msra.mxu0 0.0
    %1251 = vmatprep.subr.mxu0 0.0
    %1252 = vmatpush1.msra.mxu0 0.0
    %1253 = vmatprep.subr.mxu0 0.0
    %1254 = vmatpush1.msra.mxu0 0.0
    %1255 = vmatprep.subr.mxu0 0.0
    %1256 = vmatpush1.msra.mxu0 0.0
    %1257 = vmatprep.subr.mxu0 0.0
    %1258 = vmatpush1.msra.mxu0 0.0
    %1259 = vmatprep.subr.mxu0 0.0
    %1260 = vmatpush1.msra.mxu0 0.0
    %1261 = vmatprep.subr.mxu0 0.0
    %1262 = vmatpush1.msra.mxu0 0.0
    %1263 = vmatprep.subr.mxu0 0.0
    %1264 = vmatpush1.msra.mxu0 0.0
    %1265 = vmatprep.subr.mxu0 0.0
    %1266 = vmatpush1.msra.mxu0 0.0
    %1267 = vmatprep.subr.mxu0 0.0
    %1268 = vmatpush1.msra.mxu0 %v1232
    %1269 = vmatprep.subr.mxu0 0.0
    %1270 = vmatpush2.msra.mxu0 0.0
    %1271 = vmatprep.subr.mxu0 0.0
    %1272 = vmatpush2.msra.mxu0 0.0
    %1273 = vmatprep.subr.mxu0 0.0
    %1274 = vmatpush2.msra.mxu0 0.0
    %1275 = vmatprep.subr.mxu0 0.0
    %1276 = vmatpush2.msra.mxu0 0.0
    %1277 = vmatprep.subr.mxu0 0.0
    %1278 = vmatpush2.msra.mxu0 0.0
    %1279 = vmatprep.subr.mxu0 0.0
    %1280 = vmatpush2.msra.mxu0 0.0
    %1281 = vmatprep.subr.mxu0 0.0
    %1282 = vmatpush2.msra.mxu0 0.0
    %1283 = vmatprep.subr.mxu0 0.0
    %1284 = vmatpush2.msra.mxu0 0.0
    %1285 = vmatprep.subr.mxu0 0.0
    %1286 = vmatpush2.msra.mxu0 0.0
    %1287 = vmatprep.subr.mxu0 0.0
    %1288 = vmatpush2.msra.mxu0 0.0
    %1289 = vmatprep.subr.mxu0 0.0
    %1290 = vmatpush2.msra.mxu0 0.0
    %1291 = vmatprep.subr.mxu0 0.0
    %1292 = vmatpush2.msra.mxu0 0.0
    %1293 = vmatprep.subr.mxu0 0.0
    %1294 = vmatpush2.msra.mxu0 0.0
    %1295 = vmatprep.subr.mxu0 0.0
    %1296 = vmatpush2.msra.mxu0 0.0
    %1297 = vmatprep.subr.mxu0 0.0
    %1298 = vmatpush2.msra.mxu0 0.0
    %1299 = vmatprep.subr.mxu0 0.0
    %1300 = vmatpush2.msra.mxu0 0.0
    %1301 = vmatprep.mubr.f32.mxu0 0.0
    %1302 = vmatmul.mubr.f32.gmra.mxu0 %v1235
    %v1303 = vpop.f32.mrf.mxu0
    %v1304 = vadd.f32 0.0, %v1303
    %v1305 = vpop.f32.mrf.mxu0
    %1306 = vdwg.mxu0
    %s1307 = scalar_lea.vmem [#allocation7], 16
    %v1308 = vld [vmem:[%s1307] sm:$0xff]
    %v1310 = vsel %vm156, %v1228, 0
    %v1313 = vsel %vm156, %v1304, 0
    %1315 = vmatprep.subr.mxu0 0.0
    %1316 = vmatpush1.msra.mxu0 0.0
    %1317 = vmatprep.subr.mxu0 0.0
    %1318 = vmatpush1.msra.mxu0 0.0
    %1319 = vmatprep.subr.mxu0 0.0
    %1320 = vmatpush1.msra.mxu0 0.0
    %1321 = vmatprep.subr.mxu0 0.0
    %1322 = vmatpush1.msra.mxu0 0.0
    %1323 = vmatprep.subr.mxu0 0.0
    %1324 = vmatpush1.msra.mxu0 0.0
    %1325 = vmatprep.subr.mxu0 0.0
    %1326 = vmatpush1.msra.mxu0 0.0
    %1327 = vmatprep.subr.mxu0 0.0
    %1328 = vmatpush1.msra.mxu0 0.0
    %1329 = vmatprep.subr.mxu0 0.0
    %1330 = vmatpush1.msra.mxu0 0.0
    %1331 = vmatprep.subr.mxu0 0.0
    %1332 = vmatpush1.msra.mxu0 0.0
    %1333 = vmatprep.subr.mxu0 0.0
    %1334 = vmatpush1.msra.mxu0 0.0
    %1335 = vmatprep.subr.mxu0 0.0
    %1336 = vmatpush1.msra.mxu0 0.0
    %1337 = vmatprep.subr.mxu0 0.0
    %1338 = vmatpush1.msra.mxu0 0.0
    %1339 = vmatprep.subr.mxu0 0.0
    %1340 = vmatpush1.msra.mxu0 0.0
    %1341 = vmatprep.subr.mxu0 0.0
    %1342 = vmatpush1.msra.mxu0 0.0
    %1343 = vmatprep.subr.mxu0 0.0
    %1344 = vmatpush1.msra.mxu0 0.0
    %1345 = vmatprep.subr.mxu0 0.0
    %1346 = vmatpush1.msra.mxu0 %v1308
    %1347 = vmatprep.subr.mxu0 0.0
    %1348 = vmatpush2.msra.mxu0 0.0
    %1349 = vmatprep.subr.mxu0 0.0
    %1350 = vmatpush2.msra.mxu0 0.0
    %1351 = vmatprep.subr.mxu0 0.0
    %1352 = vmatpush2.msra.mxu0 0.0
    %1353 = vmatprep.subr.mxu0 0.0
    %1354 = vmatpush2.msra.mxu0 0.0
    %1355 = vmatprep.subr.mxu0 0.0
    %1356 = vmatpush2.msra.mxu0 0.0
    %1357 = vmatprep.subr.mxu0 0.0
    %1358 = vmatpush2.msra.mxu0 0.0
    %1359 = vmatprep.subr.mxu0 0.0
    %1360 = vmatpush2.msra.mxu0 0.0
    %1361 = vmatprep.subr.mxu0 0.0
    %1362 = vmatpush2.msra.mxu0 0.0
    %1363 = vmatprep.subr.mxu0 0.0
    %1364 = vmatpush2.msra.mxu0 0.0
    %1365 = vmatprep.subr.mxu0 0.0
    %1366 = vmatpush2.msra.mxu0 0.0
    %1367 = vmatprep.subr.mxu0 0.0
    %1368 = vmatpush2.msra.mxu0 0.0
    %1369 = vmatprep.subr.mxu0 0.0
    %1370 = vmatpush2.msra.mxu0 0.0
    %1371 = vmatprep.subr.mxu0 0.0
    %1372 = vmatpush2.msra.mxu0 0.0
    %1373 = vmatprep.subr.mxu0 0.0
    %1374 = vmatpush2.msra.mxu0 0.0
    %1375 = vmatprep.subr.mxu0 0.0
    %1376 = vmatpush2.msra.mxu0 0.0
    %1377 = vmatprep.subr.mxu0 0.0
    %1378 = vmatpush2.msra.mxu0 0.0
    %1379 = vmatprep.mubr.f32.mxu0 0.0
    %1380 = vmatmul.mubr.f32.gmra.mxu0 %v1310
    %v1381 = vpop.f32.mrf.mxu0
    %v1382 = vadd.f32 0.0, %v1381
    %v1383 = vpop.f32.mrf.mxu0
    %1384 = vmatprep.mubr.f32.mxu0 0.0
    %1385 = vmatmul.mubr.f32.gmra.mxu0 %v1313
    %v1386 = vpop.f32.mrf.mxu0
    %v1387 = vadd.f32 0.0, %v1386
    %v1388 = vpop.f32.mrf.mxu0
    %1389 = vdwg.mxu0
    %v1390 = vadd.f32 %v969, %v1382
    %v1391 = vadd.f32 %v974, %v1387
    %1392 = vrot.lane.b32.xlu0 %v139, 104
    %v1393 = vpop.permute.xlu0 %1392
    %1394 = vrot.lane.b32.xlu0 %v139, 72
    %v1395 = vpop.permute.xlu0 %1394
    %v1396 = vsel %vm156, %v1393, 0
    %v1398 = vsel %vm156, %v1395, 0
    %1400 = vmatprep.subr.mxu0 0.0
    %1401 = vmatpush1.xpose.msra.mxu0 0.0
    %1402 = vmatprep.subr.mxu0 0.0
    %1403 = vmatpush1.xpose.msra.mxu0 0.0
    %1404 = vmatprep.subr.mxu0 0.0
    %1405 = vmatpush1.xpose.msra.mxu0 0.0
    %1406 = vmatprep.subr.mxu0 0.0
    %1407 = vmatpush1.xpose.msra.mxu0 0.0
    %1408 = vmatprep.subr.mxu0 0.0
    %1409 = vmatpush1.xpose.msra.mxu0 0.0
    %1410 = vmatprep.subr.mxu0 0.0
    %1411 = vmatpush1.xpose.msra.mxu0 0.0
    %1412 = vmatprep.subr.mxu0 0.0
    %1413 = vmatpush1.xpose.msra.mxu0 0.0
    %1414 = vmatprep.subr.mxu0 0.0
    %1415 = vmatpush1.xpose.msra.mxu0 0.0
    %1416 = vmatprep.subr.mxu0 0.0
    %1417 = vmatpush1.xpose.msra.mxu0 0.0
    %1418 = vmatprep.subr.mxu0 0.0
    %1419 = vmatpush1.xpose.msra.mxu0 0.0
    %1420 = vmatprep.subr.mxu0 0.0
    %1421 = vmatpush1.xpose.msra.mxu0 0.0
    %1422 = vmatprep.subr.mxu0 0.0
    %1423 = vmatpush1.xpose.msra.mxu0 0.0
    %1424 = vmatprep.subr.mxu0 0.0
    %1425 = vmatpush1.xpose.msra.mxu0 0.0
    %1426 = vmatprep.subr.mxu0 0.0
    %1427 = vmatpush1.xpose.msra.mxu0 0.0
    %1428 = vmatprep.subr.mxu0 0.0
    %1429 = vmatpush1.xpose.msra.mxu0 0.0
    %1430 = vmatprep.subr.mxu0 0.0
    %1431 = vmatpush1.xpose.msra.mxu0 %v1398
    %1432 = vmatprep.subr.mxu0 0.0
    %1433 = vmatpush2.xpose.msra.mxu0 0.0
    %1434 = vmatprep.subr.mxu0 0.0
    %1435 = vmatpush2.xpose.msra.mxu0 0.0
    %1436 = vmatprep.subr.mxu0 0.0
    %1437 = vmatpush2.xpose.msra.mxu0 0.0
    %1438 = vmatprep.subr.mxu0 0.0
    %1439 = vmatpush2.xpose.msra.mxu0 0.0
    %1440 = vmatprep.subr.mxu0 0.0
    %1441 = vmatpush2.xpose.msra.mxu0 0.0
    %1442 = vmatprep.subr.mxu0 0.0
    %1443 = vmatpush2.xpose.msra.mxu0 0.0
    %1444 = vmatprep.subr.mxu0 0.0
    %1445 = vmatpush2.xpose.msra.mxu0 0.0
    %1446 = vmatprep.subr.mxu0 0.0
    %1447 = vmatpush2.xpose.msra.mxu0 0.0
    %1448 = vmatprep.subr.mxu0 0.0
    %1449 = vmatpush2.xpose.msra.mxu0 0.0
    %1450 = vmatprep.subr.mxu0 0.0
    %1451 = vmatpush2.xpose.msra.mxu0 0.0
    %1452 = vmatprep.subr.mxu0 0.0
    %1453 = vmatpush2.xpose.msra.mxu0 0.0
    %1454 = vmatprep.subr.mxu0 0.0
    %1455 = vmatpush2.xpose.msra.mxu0 0.0
    %1456 = vmatprep.subr.mxu0 0.0
    %1457 = vmatpush2.xpose.msra.mxu0 0.0
    %1458 = vmatprep.subr.mxu0 0.0
    %1459 = vmatpush2.xpose.msra.mxu0 0.0
    %1460 = vmatprep.subr.mxu0 0.0
    %1461 = vmatpush2.xpose.msra.mxu0 0.0
    %1462 = vmatprep.subr.mxu0 0.0
    %1463 = vmatpush2.xpose.msra.mxu0 0.0
    %1464 = vmatprep.mubr.f32.mxu0 0.0
    %1465 = vmatmul.mubr.f32.gmra.mxu0 %v1396
    %v1466 = vpop.f32.mrf.mxu0
    %v1467 = vadd.f32 %v152, %v1466
    %v1468 = vpop.f32.mrf.mxu0
    %1469 = vdwg.mxu0
    %1470 = vrot.lane.b32.xlu0 %v144, 104
    %v1471 = vpop.permute.xlu0 %1470
    %1472 = vrot.lane.b32.xlu0 %v144, 72
    %v1473 = vpop.permute.xlu0 %1472
    %v1474 = vsel %vm156, %v1471, 0
    %v1476 = vsel %vm156, %v1473, 0
    %1478 = vmatprep.subr.mxu0 0.0
    %1479 = vmatpush1.xpose.msra.mxu0 0.0
    %1480 = vmatprep.subr.mxu0 0.0
    %1481 = vmatpush1.xpose.msra.mxu0 0.0
    %1482 = vmatprep.subr.mxu0 0.0
    %1483 = vmatpush1.xpose.msra.mxu0 0.0
    %1484 = vmatprep.subr.mxu0 0.0
    %1485 = vmatpush1.xpose.msra.mxu0 0.0
    %1486 = vmatprep.subr.mxu0 0.0
    %1487 = vmatpush1.xpose.msra.mxu0 0.0
    %1488 = vmatprep.subr.mxu0 0.0
    %1489 = vmatpush1.xpose.msra.mxu0 0.0
    %1490 = vmatprep.subr.mxu0 0.0
    %1491 = vmatpush1.xpose.msra.mxu0 0.0
    %1492 = vmatprep.subr.mxu0 0.0
    %1493 = vmatpush1.xpose.msra.mxu0 0.0
    %1494 = vmatprep.subr.mxu0 0.0
    %1495 = vmatpush1.xpose.msra.mxu0 0.0
    %1496 = vmatprep.subr.mxu0 0.0
    %1497 = vmatpush1.xpose.msra.mxu0 0.0
    %1498 = vmatprep.subr.mxu0 0.0
    %1499 = vmatpush1.xpose.msra.mxu0 0.0
    %1500 = vmatprep.subr.mxu0 0.0
    %1501 = vmatpush1.xpose.msra.mxu0 0.0
    %1502 = vmatprep.subr.mxu0 0.0
    %1503 = vmatpush1.xpose.msra.mxu0 0.0
    %1504 = vmatprep.subr.mxu0 0.0
    %1505 = vmatpush1.xpose.msra.mxu0 0.0
    %1506 = vmatprep.subr.mxu0 0.0
    %1507 = vmatpush1.xpose.msra.mxu0 0.0
    %1508 = vmatprep.subr.mxu0 0.0
    %1509 = vmatpush1.xpose.msra.mxu0 %v1476
    %1510 = vmatprep.subr.mxu0 0.0
    %1511 = vmatpush2.xpose.msra.mxu0 0.0
    %1512 = vmatprep.subr.mxu0 0.0
    %1513 = vmatpush2.xpose.msra.mxu0 0.0
    %1514 = vmatprep.subr.mxu0 0.0
    %1515 = vmatpush2.xpose.msra.mxu0 0.0
    %1516 = vmatprep.subr.mxu0 0.0
    %1517 = vmatpush2.xpose.msra.mxu0 0.0
    %1518 = vmatprep.subr.mxu0 0.0
    %1519 = vmatpush2.xpose.msra.mxu0 0.0
    %1520 = vmatprep.subr.mxu0 0.0
    %1521 = vmatpush2.xpose.msra.mxu0 0.0
    %1522 = vmatprep.subr.mxu0 0.0
    %1523 = vmatpush2.xpose.msra.mxu0 0.0
    %1524 = vmatprep.subr.mxu0 0.0
    %1525 = vmatpush2.xpose.msra.mxu0 0.0
    %1526 = vmatprep.subr.mxu0 0.0
    %1527 = vmatpush2.xpose.msra.mxu0 0.0
    %1528 = vmatprep.subr.mxu0 0.0
    %1529 = vmatpush2.xpose.msra.mxu0 0.0
    %1530 = vmatprep.subr.mxu0 0.0
    %1531 = vmatpush2.xpose.msra.mxu0 0.0
    %1532 = vmatprep.subr.mxu0 0.0
    %1533 = vmatpush2.xpose.msra.mxu0 0.0
    %1534 = vmatprep.subr.mxu0 0.0
    %1535 = vmatpush2.xpose.msra.mxu0 0.0
    %1536 = vmatprep.subr.mxu0 0.0
    %1537 = vmatpush2.xpose.msra.mxu0 0.0
    %1538 = vmatprep.subr.mxu0 0.0
    %1539 = vmatpush2.xpose.msra.mxu0 0.0
    %1540 = vmatprep.subr.mxu0 0.0
    %1541 = vmatpush2.xpose.msra.mxu0 0.0
    %1542 = vmatprep.mubr.f32.mxu0 0.0
    %1543 = vmatmul.mubr.f32.gmra.mxu0 %v1474
    %v1544 = vpop.f32.mrf.mxu0
    %v1545 = vadd.f32 %v152, %v1544
    %v1546 = vpop.f32.mrf.mxu0
    %1547 = vdwg.mxu0
    %v1548 = vsel %vm156, %v1467, -inf
    %1549 = vmax.xlane.f32.xlu0 %v1548
    %v1550 = vpop.xlane.xlu0 %1549
    %v1551 = vsel %vm156, %v1545, -inf
    %1552 = vmax.xlane.f32.xlu0 %v1551
    %v1553 = vpop.xlane.xlu0 %1552
    %v1554 = vsub.f32 %v1467, %v1550
    %v1555 = vsub.f32 %v1545, %v1553
    %v1556 = vmul.f32 %v1554, 1.442695
    %v1557 = vpow.pop %v1556
    %v1558 = vmul.f32 %v1555, 1.442695
    %v1559 = vpow.pop %v1558
    %v1560 = vsel %vm156, %v1557, 0.0
    %1561 = vadd.xlane.f32.xlu0 %v1560
    %v1562 = vpop.xlane.xlu0 %1561
    %v1563 = vsel %vm156, %v1559, 0.0
    %1564 = vadd.xlane.f32.xlu0 %v1563
    %v1565 = vpop.xlane.xlu0 %1564
    %v1566 = vrcp.pop %v1562
    %v1567 = vrcp.pop %v1565
    %v1568 = vmul.f32 %v1557, %v1566
    %v1569 = vmul.f32 %v1559, %v1567
    %1570 = vrot.lane.b32.xlu0 %v139, 40
    %v1571 = vpop.permute.xlu0 %1570
    %v1574 = vsel %vm156, %v1568, 0
    %1576 = vmatprep.subr.mxu0 0.0
    %1577 = vmatpush1.msra.mxu0 0.0
    %1578 = vmatprep.subr.mxu0 0.0
    %1579 = vmatpush1.msra.mxu0 0.0
    %1580 = vmatprep.subr.mxu0 0.0
    %1581 = vmatpush1.msra.mxu0 0.0
    %1582 = vmatprep.subr.mxu0 0.0
    %1583 = vmatpush1.msra.mxu0 0.0
    %1584 = vmatprep.subr.mxu0 0.0
    %1585 = vmatpush1.msra.mxu0 0.0
    %1586 = vmatprep.subr.mxu0 0.0
    %1587 = vmatpush1.msra.mxu0 0.0
    %1588 = vmatprep.subr.mxu0 0.0
    %1589 = vmatpush1.msra.mxu0 0.0
    %1590 = vmatprep.subr.mxu0 0.0
    %1591 = vmatpush1.msra.mxu0 0.0
    %1592 = vmatprep.subr.mxu0 0.0
    %1593 = vmatpush1.msra.mxu0 0.0
    %1594 = vmatprep.subr.mxu0 0.0
    %1595 = vmatpush1.msra.mxu0 0.0
    %1596 = vmatprep.subr.mxu0 0.0
    %1597 = vmatpush1.msra.mxu0 0.0
    %1598 = vmatprep.subr.mxu0 0.0
    %1599 = vmatpush1.msra.mxu0 0.0
    %1600 = vmatprep.subr.mxu0 0.0
    %1601 = vmatpush1.msra.mxu0 0.0
    %1602 = vmatprep.subr.mxu0 0.0
    %1603 = vmatpush1.msra.mxu0 0.0
    %1604 = vmatprep.subr.mxu0 0.0
    %1605 = vmatpush1.msra.mxu0 0.0
    %1606 = vmatprep.subr.mxu0 0.0
    %1607 = vmatpush1.msra.mxu0 %v1571
    %1608 = vmatprep.subr.mxu0 0.0
    %1609 = vmatpush2.msra.mxu0 0.0
    %1610 = vmatprep.subr.mxu0 0.0
    %1611 = vmatpush2.msra.mxu0 0.0
    %1612 = vmatprep.subr.mxu0 0.0
    %1613 = vmatpush2.msra.mxu0 0.0
    %1614 = vmatprep.subr.mxu0 0.0
    %1615 = vmatpush2.msra.mxu0 0.0
    %1616 = vmatprep.subr.mxu0 0.0
    %1617 = vmatpush2.msra.mxu0 0.0
    %1618 = vmatprep.subr.mxu0 0.0
    %1619 = vmatpush2.msra.mxu0 0.0
    %1620 = vmatprep.subr.mxu0 0.0
    %1621 = vmatpush2.msra.mxu0 0.0
    %1622 = vmatprep.subr.mxu0 0.0
    %1623 = vmatpush2.msra.mxu0 0.0
    %1624 = vmatprep.subr.mxu0 0.0
    %1625 = vmatpush2.msra.mxu0 0.0
    %1626 = vmatprep.subr.mxu0 0.0
    %1627 = vmatpush2.msra.mxu0 0.0
    %1628 = vmatprep.subr.mxu0 0.0
    %1629 = vmatpush2.msra.mxu0 0.0
    %1630 = vmatprep.subr.mxu0 0.0
    %1631 = vmatpush2.msra.mxu0 0.0
    %1632 = vmatprep.subr.mxu0 0.0
    %1633 = vmatpush2.msra.mxu0 0.0
    %1634 = vmatprep.subr.mxu0 0.0
    %1635 = vmatpush2.msra.mxu0 0.0
    %1636 = vmatprep.subr.mxu0 0.0
    %1637 = vmatpush2.msra.mxu0 0.0
    %1638 = vmatprep.subr.mxu0 0.0
    %1639 = vmatpush2.msra.mxu0 0.0
    %1640 = vmatprep.mubr.f32.mxu0 0.0
    %1641 = vmatmul.mubr.f32.gmra.mxu0 %v1574
    %v1642 = vpop.f32.mrf.mxu0
    %v1643 = vadd.f32 0.0, %v1642
    %v1644 = vpop.f32.mrf.mxu0
    %1645 = vdwg.mxu0
    %1646 = vrot.lane.b32.xlu0 %v144, 40
    %v1647 = vpop.permute.xlu0 %1646
    %v1650 = vsel %vm156, %v1569, 0
    %1652 = vmatprep.subr.mxu0 0.0
    %1653 = vmatpush1.msra.mxu0 0.0
    %1654 = vmatprep.subr.mxu0 0.0
    %1655 = vmatpush1.msra.mxu0 0.0
    %1656 = vmatprep.subr.mxu0 0.0
    %1657 = vmatpush1.msra.mxu0 0.0
    %1658 = vmatprep.subr.mxu0 0.0
    %1659 = vmatpush1.msra.mxu0 0.0
    %1660 = vmatprep.subr.mxu0 0.0
    %1661 = vmatpush1.msra.mxu0 0.0
    %1662 = vmatprep.subr.mxu0 0.0
    %1663 = vmatpush1.msra.mxu0 0.0
    %1664 = vmatprep.subr.mxu0 0.0
    %1665 = vmatpush1.msra.mxu0 0.0
    %1666 = vmatprep.subr.mxu0 0.0
    %1667 = vmatpush1.msra.mxu0 0.0
    %1668 = vmatprep.subr.mxu0 0.0
    %1669 = vmatpush1.msra.mxu0 0.0
    %1670 = vmatprep.subr.mxu0 0.0
    %1671 = vmatpush1.msra.mxu0 0.0
    %1672 = vmatprep.subr.mxu0 0.0
    %1673 = vmatpush1.msra.mxu0 0.0
    %1674 = vmatprep.subr.mxu0 0.0
    %1675 = vmatpush1.msra.mxu0 0.0
    %1676 = vmatprep.subr.mxu0 0.0
    %1677 = vmatpush1.msra.mxu0 0.0
    %1678 = vmatprep.subr.mxu0 0.0
    %1679 = vmatpush1.msra.mxu0 0.0
    %1680 = vmatprep.subr.mxu0 0.0
    %1681 = vmatpush1.msra.mxu0 0.0
    %1682 = vmatprep.subr.mxu0 0.0
    %1683 = vmatpush1.msra.mxu0 %v1647
    %1684 = vmatprep.subr.mxu0 0.0
    %1685 = vmatpush2.msra.mxu0 0.0
    %1686 = vmatprep.subr.mxu0 0.0
    %1687 = vmatpush2.msra.mxu0 0.0
    %1688 = vmatprep.subr.mxu0 0.0
    %1689 = vmatpush2.msra.mxu0 0.0
    %1690 = vmatprep.subr.mxu0 0.0
    %1691 = vmatpush2.msra.mxu0 0.0
    %1692 = vmatprep.subr.mxu0 0.0
    %1693 = vmatpush2.msra.mxu0 0.0
    %1694 = vmatprep.subr.mxu0 0.0
    %1695 = vmatpush2.msra.mxu0 0.0
    %1696 = vmatprep.subr.mxu0 0.0
    %1697 = vmatpush2.msra.mxu0 0.0
    %1698 = vmatprep.subr.mxu0 0.0
    %1699 = vmatpush2.msra.mxu0 0.0
    %1700 = vmatprep.subr.mxu0 0.0
    %1701 = vmatpush2.msra.mxu0 0.0
    %1702 = vmatprep.subr.mxu0 0.0
    %1703 = vmatpush2.msra.mxu0 0.0
    %1704 = vmatprep.subr.mxu0 0.0
    %1705 = vmatpush2.msra.mxu0 0.0
    %1706 = vmatprep.subr.mxu0 0.0
    %1707 = vmatpush2.msra.mxu0 0.0
    %1708 = vmatprep.subr.mxu0 0.0
    %1709 = vmatpush2.msra.mxu0 0.0
    %1710 = vmatprep.subr.mxu0 0.0
    %1711 = vmatpush2.msra.mxu0 0.0
    %1712 = vmatprep.subr.mxu0 0.0
    %1713 = vmatpush2.msra.mxu0 0.0
    %1714 = vmatprep.subr.mxu0 0.0
    %1715 = vmatpush2.msra.mxu0 0.0
    %1716 = vmatprep.mubr.f32.mxu0 0.0
    %1717 = vmatmul.mubr.f32.gmra.mxu0 %v1650
    %v1718 = vpop.f32.mrf.mxu0
    %v1719 = vadd.f32 0.0, %v1718
    %v1720 = vpop.f32.mrf.mxu0
    %1721 = vdwg.mxu0
    %s1722 = scalar_lea.vmem [#allocation7], 24
    %v1723 = vld [vmem:[%s1722] sm:$0xff]
    %v1725 = vsel %vm156, %v1643, 0
    %v1728 = vsel %vm156, %v1719, 0
    %1730 = vmatprep.subr.mxu0 0.0
    %1731 = vmatpush1.msra.mxu0 0.0
    %1732 = vmatprep.subr.mxu0 0.0
    %1733 = vmatpush1.msra.mxu0 0.0
    %1734 = vmatprep.subr.mxu0 0.0
    %1735 = vmatpush1.msra.mxu0 0.0
    %1736 = vmatprep.subr.mxu0 0.0
    %1737 = vmatpush1.msra.mxu0 0.0
    %1738 = vmatprep.subr.mxu0 0.0
    %1739 = vmatpush1.msra.mxu0 0.0
    %1740 = vmatprep.subr.mxu0 0.0
    %1741 = vmatpush1.msra.mxu0 0.0
    %1742 = vmatprep.subr.mxu0 0.0
    %1743 = vmatpush1.msra.mxu0 0.0
    %1744 = vmatprep.subr.mxu0 0.0
    %1745 = vmatpush1.msra.mxu0 0.0
    %1746 = vmatprep.subr.mxu0 0.0
    %1747 = vmatpush1.msra.mxu0 0.0
    %1748 = vmatprep.subr.mxu0 0.0
    %1749 = vmatpush1.msra.mxu0 0.0
    %1750 = vmatprep.subr.mxu0 0.0
    %1751 = vmatpush1.msra.mxu0 0.0
    %1752 = vmatprep.subr.mxu0 0.0
    %1753 = vmatpush1.msra.mxu0 0.0
    %1754 = vmatprep.subr.mxu0 0.0
    %1755 = vmatpush1.msra.mxu0 0.0
    %1756 = vmatprep.subr.mxu0 0.0
    %1757 = vmatpush1.msra.mxu0 0.0
    %1758 = vmatprep.subr.mxu0 0.0
    %1759 = vmatpush1.msra.mxu0 0.0
    %1760 = vmatprep.subr.mxu0 0.0
    %1761 = vmatpush1.msra.mxu0 %v1723
    %1762 = vmatprep.subr.mxu0 0.0
    %1763 = vmatpush2.msra.mxu0 0.0
    %1764 = vmatprep.subr.mxu0 0.0
    %1765 = vmatpush2.msra.mxu0 0.0
    %1766 = vmatprep.subr.mxu0 0.0
    %1767 = vmatpush2.msra.mxu0 0.0
    %1768 = vmatprep.subr.mxu0 0.0
    %1769 = vmatpush2.msra.mxu0 0.0
    %1770 = vmatprep.subr.mxu0 0.0
    %1771 = vmatpush2.msra.mxu0 0.0
    %1772 = vmatprep.subr.mxu0 0.0
    %1773 = vmatpush2.msra.mxu0 0.0
    %1774 = vmatprep.subr.mxu0 0.0
    %1775 = vmatpush2.msra.mxu0 0.0
    %1776 = vmatprep.subr.mxu0 0.0
    %1777 = vmatpush2.msra.mxu0 0.0
    %1778 = vmatprep.subr.mxu0 0.0
    %1779 = vmatpush2.msra.mxu0 0.0
    %1780 = vmatprep.subr.mxu0 0.0
    %1781 = vmatpush2.msra.mxu0 0.0
    %1782 = vmatprep.subr.mxu0 0.0
    %1783 = vmatpush2.msra.mxu0 0.0
    %1784 = vmatprep.subr.mxu0 0.0
    %1785 = vmatpush2.msra.mxu0 0.0
    %1786 = vmatprep.subr.mxu0 0.0
    %1787 = vmatpush2.msra.mxu0 0.0
    %1788 = vmatprep.subr.mxu0 0.0
    %1789 = vmatpush2.msra.mxu0 0.0
    %1790 = vmatprep.subr.mxu0 0.0
    %1791 = vmatpush2.msra.mxu0 0.0
    %1792 = vmatprep.subr.mxu0 0.0
    %1793 = vmatpush2.msra.mxu0 0.0
    %1794 = vmatprep.mubr.f32.mxu0 0.0
    %1795 = vmatmul.mubr.f32.gmra.mxu0 %v1725
    %v1796 = vpop.f32.mrf.mxu0
    %v1797 = vadd.f32 0.0, %v1796
    %v1798 = vpop.f32.mrf.mxu0
    %1799 = vmatprep.mubr.f32.mxu0 0.0
    %1800 = vmatmul.mubr.f32.gmra.mxu0 %v1728
    %v1801 = vpop.f32.mrf.mxu0
    %v1802 = vadd.f32 0.0, %v1801
    %v1803 = vpop.f32.mrf.mxu0
    %1804 = vdwg.mxu0
    %v1805 = vadd.f32 %v1390, %v1797
    %v1806 = vadd.f32 %v1391, %v1802
    %v1807 = vld [vmem:[%s3] sm:$0x1]
    %v1809 = vlaneseq
    %v1810 = vshrl.u32 %v1809, 7
    %v1811 = vsub.s32 0, %v1810
    %v1812 = vrot.slane %v1807, %v1811
    %v1814 = vadd.f32 %v1805, %v1812
    %v1815 = vadd.f32 %v1806, %v1812
    %1816 = vst.msk [vmem:[#allocation8] sm:$0xff] %vm65, %v1814
    %1817 = vst.msk [vmem:[#allocation8 + $0x8] sm:$0xff] %vm65, %v1815
    // Predicated region
    $region30: #{multi_head_attention.1} parent=1 // pred_check
      _
    $region31: #{multi_head_attention.1} parent=1 // pred_check_branch
      %1819 = sbr.rel (0) target = $region33
    $region32: #{multi_head_attention.1} parent=1 // pred_region
      %s1821 = ssub.s32 256, 256
      %1822 = vsyncadd [#allocation4], %s1821
      %s1823 = sshll.u32 [#allocation8], 4
      %s1824 = int_to_ptr.vmem [resolvable:$true] %s1823
      %1829 = dma.vmem_to_hbm [thread:$0]  %s1824, 256, %s4, [#allocation4], 128, 128, 8
    $region33: #{multi_head_attention.1} parent=1 // pred_fallthru
      _
    // Predicated region
    $region34: #{multi_head_attention.1} parent=1 // pred_check
      _
    $region35: #{multi_head_attention.1} parent=1 // pred_check_branch
      %1831 = sbr.rel (0) target = $region37
    $region36: #{multi_head_attention.1} parent=1 // pred_region
      %1832 = dma.done [#allocation4], 256
    $region37: #{multi_head_attention.1} parent=1 // pred_fallthru
      _
    %1833 = vsyncpa [#allocation3], 1
    %1834 = vsyncpa [#allocation6], 1
    %1835 = vsyncpa [#allocation4], 1

</llo_original>
